<compile_context>
chip_gen: v5e
topology: v5e:2x2
jax: 0.10.0
libtpu: 0.0.40
codegen_flags: <defaults>
</compile_context>

<pallas_src>
import functools

import numpy as np

import jax
import jax.numpy as jnp
from jax.experimental import pallas as pl
from jax.experimental.pallas import tpu as pltpu

# ---- model hyper-parameters (small, consistent with the module) -------------
B = 2            # batch_size
F = 4            # num_features
P = 16           # num_particles  (P - 12 must be > 0)
NF = 4           # n_filter
LATENT = 8       # latent_dim
FLAT = 4 * NF * (P - 12)     # fc1 input / fc4 output size  (= 64)
HID = 1500                   # fc hidden size (as in the module)
HID_PAD = 1536               # HID padded to a multiple of 128 / 256

L1, L2, L3 = P - 4, P - 8, P - 12   # conv1/2/3 output lengths: 12, 8, 4

CONV_W = 64                  # padded square size of the unrolled conv matrices
ENC_W = 2 * LATENT + FLAT    # 80 : fused [fc2 | fc4] output width
OUT_W = 128                  # lane-dense merged output width: [recon(64) | kl]
N_BIAS_ROWS = 9              # rows of the f32 bias blob
B_ROW_FC1, B_ROW_FC3, B_ROW_CONV0, B_ROW_OUT = 0, 1, 2, 8


# ----------------------------- fused Pallas kernel ---------------------------
def _vae_kernel(x_ref, eps_ref, conv_ref, w_in_ref, w_out_ref, b_ref, out_ref,
                *, inv_batch):
    f32, bf16 = jnp.float32, jnp.bfloat16
    relu = lambda v: jnp.maximum(v, 0.0)

    def conv_mm(a, idx):
        # idx-th unrolled conv matrix (64x64, bf16) + its f32 bias row.
        w = conv_ref[idx]                                        # (64, 64)
        bias = b_ref[B_ROW_CONV0 + idx:B_ROW_CONV0 + idx + 1, 0:CONV_W]
        return jnp.dot(a.astype(bf16), w, preferred_element_type=f32) + bias

    w_out = w_out_ref[...]                                       # (1536, 80) bf16
    b_out = b_ref[B_ROW_OUT:B_ROW_OUT + 1, 0:ENC_W]              # (1, 80)    f32

    # ------------------------------ encoder -----------------------------------
    x = x_ref[...]                                               # (B, 64) f32
    h = relu(conv_mm(x, 0))                                      # conv1 + relu
    h = relu(conv_mm(h, 1))                                      # conv2 + relu
    h = relu(conv_mm(h, 2))                                      # conv3 + relu

    # fc1 (bf16 weights, f32 accumulation; padded lanes stay exactly 0)
    h = relu(jnp.dot(h.astype(bf16), w_in_ref[0:FLAT, :],
                     preferred_element_type=f32)
             + b_ref[B_ROW_FC1:B_ROW_FC1 + 1, :])                # (B, 1536)

    # fc2: one fused matmul over the whole (1536, 80) blob; the fc4 columns of
    # this product are discarded (N<=128 costs the same MXU sweep either way).
    enc = jnp.dot(h.astype(bf16), w_out, preferred_element_type=f32) + b_out
    mean = enc[:, 0:LATENT]
    # epsilon-stabilized logvar feeds BOTH the KL and the reparameterization,
    # exactly as in the PyTorch module's encode()/forward().
    logvar = enc[:, LATENT:2 * LATENT] + 1e-6

    # ----------------- KL + reparameterize (single EUP exp) -------------------
    std = jnp.exp(0.5 * logvar)                                  # exp(logvar) == std*std
    kl = 0.5 * jnp.sum(mean * mean + std * std - logvar - 1.0) * inv_batch
    z = mean + eps_ref[...] * std                                # (B, LATENT)

    # ------------------------------ decoder -----------------------------------
    # fc3 (K = 8): VPU broadcast-FMA chain instead of another MXU fill/drain on
    # the serial z -> decoder path.
    fc3w = w_in_ref[FLAT:FLAT + LATENT, :].astype(f32)           # (8, 1536)
    d = b_ref[B_ROW_FC3:B_ROW_FC3 + 1, :] + z[:, 0:1] * fc3w[0:1, :]
    for k in range(1, LATENT):
        d = d + z[:, k:k + 1] * fc3w[k:k + 1, :]
    d = relu(d)                                                  # (B, 1536)

    # fc4: reuse the fused (1536, 80) matmul; keep only the fc4 columns.
    dec = jnp.dot(d.astype(bf16), w_out, preferred_element_type=f32) + b_out
    d = relu(dec[:, 2 * LATENT:ENC_W])                           # (B, 64)

    d = relu(conv_mm(d, 3))                                      # convT4 + relu
    d = relu(conv_mm(d, 4))                                      # convT5 + relu
    d = jax.nn.sigmoid(conv_mm(d, 5))                            # convT6 + sigmoid

    # Single lane-dense (B, 128) store + single output DMA: [recon | kl].
    kl_blk = jnp.zeros((B, OUT_W - F * P), f32) + kl
    out_ref[...] = jnp.concatenate([d, kl_blk], axis=1)


# ------------------- conv -> dense-matrix prep (one-time, host) ---------------
def _conv_as_matrix(w, lin):
    """Valid stride-1 Conv1d weight (Cout, Cin, kw) -> dense (Cin*lin, Cout*lout)
    acting on c-major flattened activations (PyTorch .view(B, -1) order)."""
    w = np.asarray(w, np.float32)
    cout, cin, kw = w.shape
    lout = lin - kw + 1
    m = np.zeros((cin * lin, cout * lout), np.float32)
    for co in range(cout):
        for ci in range(cin):
            for k in range(kw):
                for q in range(lout):
                    m[ci * lin + q + k, co * lout + q] += w[co, ci, k]
    return m


def _convT_as_matrix(w, lin):
    """Stride-1 pad-0 ConvTranspose1d weight (Cin, Cout, kw) -> dense
    (Cin*lin, Cout*lout) on c-major flattened activations; lout = lin+kw-1."""
    w = np.asarray(w, np.float32)
    cin, cout, kw = w.shape
    lout = lin + kw - 1
    m = np.zeros((cin * lin, cout * lout), np.float32)
    for ci in range(cin):
        for co in range(cout):
            for k in range(kw):
                for p in range(lin):
                    m[ci * lin + p, co * lout + p + k] += w[ci, co, k]
    return m


def prep_params(p):
    """One-time conversion of PyTorch-layout params into 4 kernel-ready blobs."""
    tonp = lambda a: np.asarray(a, np.float32)

    def pad_mat(m):
        out = np.zeros((CONV_W, CONV_W), np.float32)
        out[:m.shape[0], :m.shape[1]] = m
        return out

    def pad_row(v):
        out = np.zeros((CONV_W,), np.float32)
        out[:v.shape[0]] = v
        return out

    # ---- unrolled conv matrices, zero-padded to 64x64 (padded lanes = 0) ----
    m1 = _conv_as_matrix(tonp(p["w1"]).reshape(NF, F, 5), P)              # (64, 48)
    m2 = _conv_as_matrix(tonp(p["w2"]).reshape(2 * NF, NF, 5), L1)        # (48, 64)
    m3 = _conv_as_matrix(tonp(p["w3"]).reshape(4 * NF, 2 * NF, 5), L2)    # (64, 64)
    m4 = _convT_as_matrix(tonp(p["w4"]).reshape(4 * NF, 2 * NF, 5), L3)   # (64, 64)
    m5 = _convT_as_matrix(tonp(p["w5"]).reshape(2 * NF, NF, 5), L2)       # (64, 48)
    m6 = _convT_as_matrix(tonp(p["w6"]).reshape(NF, F, 5), L1)            # (48, 64)
    convs = np.stack([pad_mat(m) for m in (m1, m2, m3, m4, m5, m6)], 0)   # (6,64,64)

    # per-output-position conv biases (c-major), zero-padded to 64
    b1r = np.repeat(tonp(p["b1"]), L1)
    b2r = np.repeat(tonp(p["b2"]), L2)
    b3r = np.repeat(tonp(p["b3"]), L3)
    b4r = np.repeat(tonp(p["b4"]), L2)
    b5r = np.repeat(tonp(p["b5"]), L1)
    b6_flat = tonp(p["b6"]).reshape(-1)
    b6r = np.repeat(b6_flat, m6.shape[1] // b6_flat.size)        # general in Cout

    # ---- fc weight blobs (pre-transposed, HID padded to 1536, bf16) ----
    w_in = np.zeros((80, HID_PAD), np.float32)                   # fc1^T | fc3^T
    w_in[0:FLAT, 0:HID] = tonp(p["fc1_w"]).T
    w_in[FLAT:FLAT + LATENT, 0:HID] = tonp(p["fc3_w"]).T

    w_out = np.zeros((HID_PAD, ENC_W), np.float32)               # fc2^T | fc4^T
    w_out[0:HID, 0:2 * LATENT] = tonp(p["fc2_w"]).T
    w_out[0:HID, 2 * LATENT:ENC_W] = tonp(p["fc4_w"]).T

    # ---- f32 bias blob ----
    biases = np.zeros((N_BIAS_ROWS, HID_PAD), np.float32)
    biases[B_ROW_FC1, 0:HID] = tonp(p["fc1_b"])
    biases[B_ROW_FC3, 0:HID] = tonp(p["fc3_b"])
    for i, br in enumerate((b1r, b2r, b3r, b4r, b5r, b6r)):
        biases[B_ROW_CONV0 + i, 0:CONV_W] = pad_row(br)
    biases[B_ROW_OUT, 0:2 * LATENT] = tonp(p["fc2_b"])
    biases[B_ROW_OUT, 2 * LATENT:ENC_W] = tonp(p["fc4_b"])

    return dict(
        convs=jnp.asarray(convs, jnp.bfloat16),
        w_in=jnp.asarray(w_in, jnp.bfloat16),
        w_out=jnp.asarray(w_out, jnp.bfloat16),
        biases=jnp.asarray(biases, jnp.float32),
    )


def _flops_estimate():
    conv = 6 * 2 * B * CONV_W * CONV_W
    fc = 2 * B * (FLAT * HID_PAD          # fc1
                  + HID_PAD * ENC_W       # fc2 (fused width)
                  + LATENT * HID_PAD      # fc3
                  + HID_PAD * ENC_W)      # fc4 (fused width)
    return conv + fc


# ------------------------------ forward ---------------------------------------
def convnet_forward(kp, x, eps):
    x2d = x.reshape(B, F * P).astype(jnp.float32)        # free view: NCHW flatten
    args = (x2d, eps.astype(jnp.float32),
            kp["convs"], kp["w_in"], kp["w_out"], kp["biases"])
    bytes_accessed = (sum(int(np.prod(a.shape)) * a.dtype.itemsize for a in args)
                      + B * OUT_W * 4)
    vmem = pl.BlockSpec(memory_space=pltpu.MemorySpace.VMEM)

    out2d = pl.pallas_call(
        functools.partial(_vae_kernel, inv_batch=1.0 / B),
        out_shape=jax.ShapeDtypeStruct((B, OUT_W), jnp.float32),
        in_specs=[vmem] * len(args),
        out_specs=vmem,
        cost_estimate=pl.CostEstimate(flops=_flops_estimate(),
                                      transcendentals=B * (LATENT + F * P),
                                      bytes_accessed=bytes_accessed),
    )(*args)
    recon = out2d[:, :F * P].reshape(B, 1, F, P)
    return recon, out2d[0, F * P]


# ------------------- pure-JAX mirror (correctness check) ----------------------
def reference_forward(kp, x, eps):
    f32, bf16 = jnp.float32, jnp.bfloat16
    relu = lambda v: jnp.maximum(v, 0.0)
    conv, w_in, w_out, b = kp["convs"], kp["w_in"], kp["w_out"], kp["biases"]

    def conv_mm(a, i):
        return (jnp.dot(a.astype(bf16), conv[i], preferred_element_type=f32)
                + b[B_ROW_CONV0 + i:B_ROW_CONV0 + i + 1, 0:CONV_W])

    x2d = x.reshape(B, F * P).astype(f32)
    h = relu(conv_mm(x2d, 0)); h = relu(conv_mm(h, 1)); h = relu(conv_mm(h, 2))
    h = relu(jnp.dot(h.astype(bf16), w_in[0:FLAT, :], preferred_element_type=f32)
             + b[B_ROW_FC1:B_ROW_FC1 + 1, :])
    enc = (jnp.dot(h.astype(bf16), w_out, preferred_element_type=f32)
           + b[B_ROW_OUT:B_ROW_OUT + 1, 0:ENC_W])
    mean = enc[:, 0:LATENT]
    logvar = enc[:, LATENT:2 * LATENT] + 1e-6
    std = jnp.exp(0.5 * logvar)
    kl = 0.5 * jnp.sum(mean * mean + std * std - logvar - 1.0) / B
    z = mean + eps * std
    d = relu(b[B_ROW_FC3:B_ROW_FC3 + 1, :]
             + jnp.dot(z, w_in[FLAT:FLAT + LATENT, :].astype(f32),
                       preferred_element_type=f32))
    dec = (jnp.dot(d.astype(bf16), w_out, preferred_element_type=f32)
           + b[B_ROW_OUT:B_ROW_OUT + 1, 0:ENC_W])
    d = relu(dec[:, 2 * LATENT:ENC_W])
    d = relu(conv_mm(d, 3)); d = relu(conv_mm(d, 4)); d = jax.nn.sigmoid(conv_mm(d, 5))
    return d.reshape(B, 1, F, P), kl


# ------------------------------ params ----------------------------------------
def init_params(key):
    def u(k, shape, fan_in):
        bound = 1.0 / jnp.sqrt(jnp.float32(fan_in))
        return jax.random.uniform(k, shape, jnp.float32, -bound, bound)

    ks = jax.random.split(key, 20)
    p = {}
    p["w1"] = u(ks[0], (NF, 1, F, 5), F * 5);               p["b1"] = u(ks[1], (NF,), F * 5)
    p["w2"] = u(ks[2], (2 * NF, NF, 1, 5), NF * 5);         p["b2"] = u(ks[3], (2 * NF,), NF * 5)
    p["w3"] = u(ks[4], (4 * NF, 2 * NF, 1, 5), 2 * NF * 5); p["b3"] = u(ks[5], (4 * NF,), 2 * NF * 5)
    p["fc1_w"] = u(ks[6], (HID, FLAT), FLAT);               p["fc1_b"] = u(ks[7], (HID,), FLAT)
    p["fc2_w"] = u(ks[8], (2 * LATENT, HID), HID);          p["fc2_b"] = u(ks[9], (2 * LATENT,), HID)
    p["fc3_w"] = u(ks[10], (HID, LATENT), LATENT);          p["fc3_b"] = u(ks[11], (HID,), LATENT)
    p["fc4_w"] = u(ks[12], (FLAT, HID), HID);               p["fc4_b"] = u(ks[13], (FLAT,), HID)
    p["w4"] = u(ks[14], (4 * NF, 2 * NF, 1, 5), 2 * NF * 5); p["b4"] = u(ks[15], (2 * NF,), 2 * NF * 5)
    p["w5"] = u(ks[16], (2 * NF, NF, 1, 5), NF * 5);        p["b5"] = u(ks[17], (NF,), NF * 5)
    p["w6"] = u(ks[18], (NF, 1, F, 5), 5);                  p["b6"] = u(ks[19], (1,), 5)
    return p


# ------------------------------ main -------------------------------------------
if __name__ == "__main__":
    key = jax.random.PRNGKey(0)
    k_params, k_x, k_eps = jax.random.split(key, 3)

    params = init_params(k_params)
    kp = prep_params(params)                       # one-time weight packing
    x = jax.random.normal(k_x, (B, 1, F, P), jnp.float32)
    eps = jax.random.normal(k_eps, (B, LATENT), jnp.float32)

    fwd = jax.jit(convnet_forward)
    out, kl = fwd(kp, x, eps)
    out = jax.block_until_ready(out)
    kl = jax.block_until_ready(kl)

    assert out.shape == (B, 1, F, P), out.shape
    assert bool(jnp.all(jnp.isfinite(out))) and bool(jnp.isfinite(kl))

    # sanity-check the fused kernel against a pure-JAX mirror of the same math
    ref_out, ref_kl = reference_forward(kp, x, eps)
    assert bool(jnp.allclose(out, ref_out, atol=5e-2, rtol=5e-2))
    assert abs(float(kl) - float(ref_kl)) <= 5e-2 * max(1.0, abs(float(ref_kl)))

    print("KERNEL_OK")
</pallas_src>

<mosaic_0001>
module attributes {stable_mosaic.version = 11 : i64} {
  func.func @_vae_kernel(%arg0: memref<2x64xf32, #tpu.memory_space<vmem>>, %arg1: memref<2x8xf32, #tpu.memory_space<vmem>>, %arg2: memref<6x64x64xbf16, #tpu.memory_space<vmem>>, %arg3: memref<80x1536xbf16, #tpu.memory_space<vmem>>, %arg4: memref<1536x80xbf16, #tpu.memory_space<vmem>>, %arg5: memref<9x1536xf32, #tpu.memory_space<vmem>>, %arg6: memref<2x128xf32, #tpu.memory_space<vmem>>) attributes {dimension_semantics = [], scalar_prefetch = 0 : i64, scratch_operands = 0 : i64, tpu.core_type = #tpu.core_type<tc>} {
    %c0 = arith.constant 0 : index
    %c0_0 = arith.constant 0 : index
    %0 = vector.load %arg4[%c0, %c0_0] : memref<1536x80xbf16, #tpu.memory_space<vmem>>, vector<1536x80xbf16>
    %c8 = arith.constant 8 : index
    %c0_1 = arith.constant 0 : index
    %1 = vector.load %arg5[%c8, %c0_1] : memref<9x1536xf32, #tpu.memory_space<vmem>>, vector<1x80xf32>
    %c0_2 = arith.constant 0 : index
    %c0_3 = arith.constant 0 : index
    %2 = vector.load %arg0[%c0_2, %c0_3] : memref<2x64xf32, #tpu.memory_space<vmem>>, vector<2x64xf32>
    %c0_4 = arith.constant 0 : index
    %c0_5 = arith.constant 0 : index
    %c0_6 = arith.constant 0 : index
    %3 = vector.load %arg2[%c0_4, %c0_5, %c0_6] : memref<6x64x64xbf16, #tpu.memory_space<vmem>>, vector<1x64x64xbf16>
    %4 = vector.shape_cast %3 : vector<1x64x64xbf16> to vector<64x64xbf16>
    %c2 = arith.constant 2 : index
    %c0_7 = arith.constant 0 : index
    %5 = vector.load %arg5[%c2, %c0_7] : memref<9x1536xf32, #tpu.memory_space<vmem>>, vector<1x64xf32>
    %6 = arith.truncf %2 : vector<2x64xf32> to vector<2x64xbf16>
    %cst = arith.constant dense<0.000000e+00> : vector<2x64xf32>
    %7 = tpu.matmul %6, %4, %cst {dimension_numbers = #tpu.dot_dimension_numbers<[1], [0], [0], [1], [0, 0, 1, 1], [], []>} : vector<2x64xbf16>, vector<64x64xbf16>, vector<2x64xf32> -> vector<2x64xf32>
    %8 = vector.broadcast %5 : vector<1x64xf32> to vector<2x64xf32>
    %9 = arith.addf %7, %8 : vector<2x64xf32>
    %cst_8 = arith.constant 0.000000e+00 : f32
    %10 = vector.broadcast %cst_8 : f32 to vector<2x64xf32>
    %11 = arith.maximumf %9, %10 : vector<2x64xf32>
    %c1 = arith.constant 1 : index
    %c0_9 = arith.constant 0 : index
    %c0_10 = arith.constant 0 : index
    %12 = vector.load %arg2[%c1, %c0_9, %c0_10] : memref<6x64x64xbf16, #tpu.memory_space<vmem>>, vector<1x64x64xbf16>
    %13 = vector.shape_cast %12 : vector<1x64x64xbf16> to vector<64x64xbf16>
    %c3 = arith.constant 3 : index
    %c0_11 = arith.constant 0 : index
    %14 = vector.load %arg5[%c3, %c0_11] : memref<9x1536xf32, #tpu.memory_space<vmem>>, vector<1x64xf32>
    %15 = arith.truncf %11 : vector<2x64xf32> to vector<2x64xbf16>
    %cst_12 = arith.constant dense<0.000000e+00> : vector<2x64xf32>
    %16 = tpu.matmul %15, %13, %cst_12 {dimension_numbers = #tpu.dot_dimension_numbers<[1], [0], [0], [1], [0, 0, 1, 1], [], []>} : vector<2x64xbf16>, vector<64x64xbf16>, vector<2x64xf32> -> vector<2x64xf32>
    %17 = vector.broadcast %14 : vector<1x64xf32> to vector<2x64xf32>
    %18 = arith.addf %16, %17 : vector<2x64xf32>
    %cst_13 = arith.constant 0.000000e+00 : f32
    %19 = vector.broadcast %cst_13 : f32 to vector<2x64xf32>
    %20 = arith.maximumf %18, %19 : vector<2x64xf32>
    %c2_14 = arith.constant 2 : index
    %c0_15 = arith.constant 0 : index
    %c0_16 = arith.constant 0 : index
    %21 = vector.load %arg2[%c2_14, %c0_15, %c0_16] : memref<6x64x64xbf16, #tpu.memory_space<vmem>>, vector<1x64x64xbf16>
    %22 = vector.shape_cast %21 : vector<1x64x64xbf16> to vector<64x64xbf16>
    %c4 = arith.constant 4 : index
    %c0_17 = arith.constant 0 : index
    %23 = vector.load %arg5[%c4, %c0_17] : memref<9x1536xf32, #tpu.memory_space<vmem>>, vector<1x64xf32>
    %24 = arith.truncf %20 : vector<2x64xf32> to vector<2x64xbf16>
    %cst_18 = arith.constant dense<0.000000e+00> : vector<2x64xf32>
    %25 = tpu.matmul %24, %22, %cst_18 {dimension_numbers = #tpu.dot_dimension_numbers<[1], [0], [0], [1], [0, 0, 1, 1], [], []>} : vector<2x64xbf16>, vector<64x64xbf16>, vector<2x64xf32> -> vector<2x64xf32>
    %26 = vector.broadcast %23 : vector<1x64xf32> to vector<2x64xf32>
    %27 = arith.addf %25, %26 : vector<2x64xf32>
    %cst_19 = arith.constant 0.000000e+00 : f32
    %28 = vector.broadcast %cst_19 : f32 to vector<2x64xf32>
    %29 = arith.maximumf %27, %28 : vector<2x64xf32>
    %30 = arith.truncf %29 : vector<2x64xf32> to vector<2x64xbf16>
    %c0_20 = arith.constant 0 : index
    %c0_21 = arith.constant 0 : index
    %31 = vector.load %arg3[%c0_20, %c0_21] : memref<80x1536xbf16, #tpu.memory_space<vmem>>, vector<64x1536xbf16>
    %cst_22 = arith.constant dense<0.000000e+00> : vector<2x1536xf32>
    %32 = tpu.matmul %30, %31, %cst_22 {dimension_numbers = #tpu.dot_dimension_numbers<[1], [0], [0], [1], [0, 0, 1, 1], [], []>} : vector<2x64xbf16>, vector<64x1536xbf16>, vector<2x1536xf32> -> vector<2x1536xf32>
    %c0_23 = arith.constant 0 : index
    %c0_24 = arith.constant 0 : index
    %33 = vector.load %arg5[%c0_23, %c0_24] : memref<9x1536xf32, #tpu.memory_space<vmem>>, vector<1x1536xf32>
    %34 = vector.broadcast %33 : vector<1x1536xf32> to vector<2x1536xf32>
    %35 = arith.addf %32, %34 : vector<2x1536xf32>
    %cst_25 = arith.constant 0.000000e+00 : f32
    %36 = vector.broadcast %cst_25 : f32 to vector<2x1536xf32>
    %37 = arith.maximumf %35, %36 : vector<2x1536xf32>
    %38 = arith.truncf %37 : vector<2x1536xf32> to vector<2x1536xbf16>
    %cst_26 = arith.constant dense<0.000000e+00> : vector<2x80xf32>
    %39 = tpu.matmul %38, %0, %cst_26 {dimension_numbers = #tpu.dot_dimension_numbers<[1], [0], [0], [1], [0, 0, 1, 1], [], []>} : vector<2x1536xbf16>, vector<1536x80xbf16>, vector<2x80xf32> -> vector<2x80xf32>
    %40 = vector.broadcast %1 : vector<1x80xf32> to vector<2x80xf32>
    %41 = arith.addf %39, %40 : vector<2x80xf32>
    %42 = vector.extract_strided_slice %41 {offsets = [0, 0], sizes = [2, 8], strides = [1, 1]} : vector<2x80xf32> to vector<2x8xf32>
    %43 = vector.extract_strided_slice %41 {offsets = [0, 8], sizes = [2, 8], strides = [1, 1]} : vector<2x80xf32> to vector<2x8xf32>
    %cst_27 = arith.constant 9.99999997E-7 : f32
    %44 = vector.broadcast %cst_27 : f32 to vector<2x8xf32>
    %45 = arith.addf %43, %44 : vector<2x8xf32>
    %cst_28 = arith.constant 5.000000e-01 : f32
    %46 = vector.broadcast %cst_28 : f32 to vector<2x8xf32>
    %47 = arith.mulf %46, %45 : vector<2x8xf32>
    %48 = math.exp %47 : vector<2x8xf32>
    %49 = arith.mulf %42, %42 : vector<2x8xf32>
    %50 = arith.mulf %48, %48 : vector<2x8xf32>
    %51 = arith.addf %49, %50 : vector<2x8xf32>
    %52 = arith.subf %51, %45 : vector<2x8xf32>
    %cst_29 = arith.constant 1.000000e+00 : f32
    %53 = vector.broadcast %cst_29 : f32 to vector<2x8xf32>
    %54 = arith.subf %52, %53 : vector<2x8xf32>
    %55 = vector.shape_cast %54 : vector<2x8xf32> to vector<1x2x8xf32>
    %cst_30 = arith.constant dense<0.000000e+00> : vector<1xf32>
    %56 = vector.multi_reduction <add>, %55, %cst_30 [1, 2] : vector<1x2x8xf32> to vector<1xf32>
    %57 = vector.shape_cast %56 : vector<1xf32> to vector<1x1x1xf32>
    %58 = vector.extract %57[0, 0, 0] : f32 from vector<1x1x1xf32>
    %cst_31 = arith.constant 5.000000e-01 : f32
    %59 = arith.mulf %cst_31, %58 : f32
    %cst_32 = arith.constant 5.000000e-01 : f32
    %60 = arith.mulf %59, %cst_32 : f32
    %c0_33 = arith.constant 0 : index
    %c0_34 = arith.constant 0 : index
    %61 = vector.load %arg1[%c0_33, %c0_34] : memref<2x8xf32, #tpu.memory_space<vmem>>, vector<2x8xf32>
    %62 = arith.mulf %61, %48 : vector<2x8xf32>
    %63 = arith.addf %42, %62 : vector<2x8xf32>
    %c64 = arith.constant 64 : index
    %c0_35 = arith.constant 0 : index
    %64 = vector.load %arg3[%c64, %c0_35] : memref<80x1536xbf16, #tpu.memory_space<vmem>>, vector<8x1536xbf16>
    %65 = arith.extf %64 : vector<8x1536xbf16> to vector<8x1536xf32>
    %c1_36 = arith.constant 1 : index
    %c0_37 = arith.constant 0 : index
    %66 = vector.load %arg5[%c1_36, %c0_37] : memref<9x1536xf32, #tpu.memory_space<vmem>>, vector<1x1536xf32>
    %67 = vector.extract_strided_slice %63 {offsets = [0, 0], sizes = [2, 1], strides = [1, 1]} : vector<2x8xf32> to vector<2x1xf32>
    %68 = vector.extract_strided_slice %65 {offsets = [0, 0], sizes = [1, 1536], strides = [1, 1]} : vector<8x1536xf32> to vector<1x1536xf32>
    %69 = vector.broadcast %67 : vector<2x1xf32> to vector<2x1536xf32>
    %70 = vector.broadcast %68 : vector<1x1536xf32> to vector<2x1536xf32>
    %71 = arith.mulf %69, %70 : vector<2x1536xf32>
    %72 = vector.broadcast %66 : vector<1x1536xf32> to vector<2x1536xf32>
    %73 = arith.addf %72, %71 : vector<2x1536xf32>
    %74 = vector.extract_strided_slice %63 {offsets = [0, 1], sizes = [2, 1], strides = [1, 1]} : vector<2x8xf32> to vector<2x1xf32>
    %75 = vector.extract_strided_slice %65 {offsets = [1, 0], sizes = [1, 1536], strides = [1, 1]} : vector<8x1536xf32> to vector<1x1536xf32>
    %76 = vector.broadcast %74 : vector<2x1xf32> to vector<2x1536xf32>
    %77 = vector.broadcast %75 : vector<1x1536xf32> to vector<2x1536xf32>
    %78 = arith.mulf %76, %77 : vector<2x1536xf32>
    %79 = arith.addf %73, %78 : vector<2x1536xf32>
    %80 = vector.extract_strided_slice %63 {offsets = [0, 2], sizes = [2, 1], strides = [1, 1]} : vector<2x8xf32> to vector<2x1xf32>
    %81 = vector.extract_strided_slice %65 {offsets = [2, 0], sizes = [1, 1536], strides = [1, 1]} : vector<8x1536xf32> to vector<1x1536xf32>
    %82 = vector.broadcast %80 : vector<2x1xf32> to vector<2x1536xf32>
    %83 = vector.broadcast %81 : vector<1x1536xf32> to vector<2x1536xf32>
    %84 = arith.mulf %82, %83 : vector<2x1536xf32>
    %85 = arith.addf %79, %84 : vector<2x1536xf32>
    %86 = vector.extract_strided_slice %63 {offsets = [0, 3], sizes = [2, 1], strides = [1, 1]} : vector<2x8xf32> to vector<2x1xf32>
    %87 = vector.extract_strided_slice %65 {offsets = [3, 0], sizes = [1, 1536], strides = [1, 1]} : vector<8x1536xf32> to vector<1x1536xf32>
    %88 = vector.broadcast %86 : vector<2x1xf32> to vector<2x1536xf32>
    %89 = vector.broadcast %87 : vector<1x1536xf32> to vector<2x1536xf32>
    %90 = arith.mulf %88, %89 : vector<2x1536xf32>
    %91 = arith.addf %85, %90 : vector<2x1536xf32>
    %92 = vector.extract_strided_slice %63 {offsets = [0, 4], sizes = [2, 1], strides = [1, 1]} : vector<2x8xf32> to vector<2x1xf32>
    %93 = vector.extract_strided_slice %65 {offsets = [4, 0], sizes = [1, 1536], strides = [1, 1]} : vector<8x1536xf32> to vector<1x1536xf32>
    %94 = vector.broadcast %92 : vector<2x1xf32> to vector<2x1536xf32>
    %95 = vector.broadcast %93 : vector<1x1536xf32> to vector<2x1536xf32>
    %96 = arith.mulf %94, %95 : vector<2x1536xf32>
    %97 = arith.addf %91, %96 : vector<2x1536xf32>
    %98 = vector.extract_strided_slice %63 {offsets = [0, 5], sizes = [2, 1], strides = [1, 1]} : vector<2x8xf32> to vector<2x1xf32>
    %99 = vector.extract_strided_slice %65 {offsets = [5, 0], sizes = [1, 1536], strides = [1, 1]} : vector<8x1536xf32> to vector<1x1536xf32>
    %100 = vector.broadcast %98 : vector<2x1xf32> to vector<2x1536xf32>
    %101 = vector.broadcast %99 : vector<1x1536xf32> to vector<2x1536xf32>
    %102 = arith.mulf %100, %101 : vector<2x1536xf32>
    %103 = arith.addf %97, %102 : vector<2x1536xf32>
    %104 = vector.extract_strided_slice %63 {offsets = [0, 6], sizes = [2, 1], strides = [1, 1]} : vector<2x8xf32> to vector<2x1xf32>
    %105 = vector.extract_strided_slice %65 {offsets = [6, 0], sizes = [1, 1536], strides = [1, 1]} : vector<8x1536xf32> to vector<1x1536xf32>
    %106 = vector.broadcast %104 : vector<2x1xf32> to vector<2x1536xf32>
    %107 = vector.broadcast %105 : vector<1x1536xf32> to vector<2x1536xf32>
    %108 = arith.mulf %106, %107 : vector<2x1536xf32>
    %109 = arith.addf %103, %108 : vector<2x1536xf32>
    %110 = vector.extract_strided_slice %63 {offsets = [0, 7], sizes = [2, 1], strides = [1, 1]} : vector<2x8xf32> to vector<2x1xf32>
    %111 = vector.extract_strided_slice %65 {offsets = [7, 0], sizes = [1, 1536], strides = [1, 1]} : vector<8x1536xf32> to vector<1x1536xf32>
    %112 = vector.broadcast %110 : vector<2x1xf32> to vector<2x1536xf32>
    %113 = vector.broadcast %111 : vector<1x1536xf32> to vector<2x1536xf32>
    %114 = arith.mulf %112, %113 : vector<2x1536xf32>
    %115 = arith.addf %109, %114 : vector<2x1536xf32>
    %cst_38 = arith.constant 0.000000e+00 : f32
    %116 = vector.broadcast %cst_38 : f32 to vector<2x1536xf32>
    %117 = arith.maximumf %115, %116 : vector<2x1536xf32>
    %118 = arith.truncf %117 : vector<2x1536xf32> to vector<2x1536xbf16>
    %cst_39 = arith.constant dense<0.000000e+00> : vector<2x80xf32>
    %119 = tpu.matmul %118, %0, %cst_39 {dimension_numbers = #tpu.dot_dimension_numbers<[1], [0], [0], [1], [0, 0, 1, 1], [], []>} : vector<2x1536xbf16>, vector<1536x80xbf16>, vector<2x80xf32> -> vector<2x80xf32>
    %120 = vector.broadcast %1 : vector<1x80xf32> to vector<2x80xf32>
    %121 = arith.addf %119, %120 : vector<2x80xf32>
    %122 = vector.extract_strided_slice %121 {offsets = [0, 16], sizes = [2, 64], strides = [1, 1]} : vector<2x80xf32> to vector<2x64xf32>
    %cst_40 = arith.constant 0.000000e+00 : f32
    %123 = vector.broadcast %cst_40 : f32 to vector<2x64xf32>
    %124 = arith.maximumf %122, %123 : vector<2x64xf32>
    %c3_41 = arith.constant 3 : index
    %c0_42 = arith.constant 0 : index
    %c0_43 = arith.constant 0 : index
    %125 = vector.load %arg2[%c3_41, %c0_42, %c0_43] : memref<6x64x64xbf16, #tpu.memory_space<vmem>>, vector<1x64x64xbf16>
    %126 = vector.shape_cast %125 : vector<1x64x64xbf16> to vector<64x64xbf16>
    %c5 = arith.constant 5 : index
    %c0_44 = arith.constant 0 : index
    %127 = vector.load %arg5[%c5, %c0_44] : memref<9x1536xf32, #tpu.memory_space<vmem>>, vector<1x64xf32>
    %128 = arith.truncf %124 : vector<2x64xf32> to vector<2x64xbf16>
    %cst_45 = arith.constant dense<0.000000e+00> : vector<2x64xf32>
    %129 = tpu.matmul %128, %126, %cst_45 {dimension_numbers = #tpu.dot_dimension_numbers<[1], [0], [0], [1], [0, 0, 1, 1], [], []>} : vector<2x64xbf16>, vector<64x64xbf16>, vector<2x64xf32> -> vector<2x64xf32>
    %130 = vector.broadcast %127 : vector<1x64xf32> to vector<2x64xf32>
    %131 = arith.addf %129, %130 : vector<2x64xf32>
    %cst_46 = arith.constant 0.000000e+00 : f32
    %132 = vector.broadcast %cst_46 : f32 to vector<2x64xf32>
    %133 = arith.maximumf %131, %132 : vector<2x64xf32>
    %c4_47 = arith.constant 4 : index
    %c0_48 = arith.constant 0 : index
    %c0_49 = arith.constant 0 : index
    %134 = vector.load %arg2[%c4_47, %c0_48, %c0_49] : memref<6x64x64xbf16, #tpu.memory_space<vmem>>, vector<1x64x64xbf16>
    %135 = vector.shape_cast %134 : vector<1x64x64xbf16> to vector<64x64xbf16>
    %c6 = arith.constant 6 : index
    %c0_50 = arith.constant 0 : index
    %136 = vector.load %arg5[%c6, %c0_50] : memref<9x1536xf32, #tpu.memory_space<vmem>>, vector<1x64xf32>
    %137 = arith.truncf %133 : vector<2x64xf32> to vector<2x64xbf16>
    %cst_51 = arith.constant dense<0.000000e+00> : vector<2x64xf32>
    %138 = tpu.matmul %137, %135, %cst_51 {dimension_numbers = #tpu.dot_dimension_numbers<[1], [0], [0], [1], [0, 0, 1, 1], [], []>} : vector<2x64xbf16>, vector<64x64xbf16>, vector<2x64xf32> -> vector<2x64xf32>
    %139 = vector.broadcast %136 : vector<1x64xf32> to vector<2x64xf32>
    %140 = arith.addf %138, %139 : vector<2x64xf32>
    %cst_52 = arith.constant 0.000000e+00 : f32
    %141 = vector.broadcast %cst_52 : f32 to vector<2x64xf32>
    %142 = arith.maximumf %140, %141 : vector<2x64xf32>
    %c5_53 = arith.constant 5 : index
    %c0_54 = arith.constant 0 : index
    %c0_55 = arith.constant 0 : index
    %143 = vector.load %arg2[%c5_53, %c0_54, %c0_55] : memref<6x64x64xbf16, #tpu.memory_space<vmem>>, vector<1x64x64xbf16>
    %144 = vector.shape_cast %143 : vector<1x64x64xbf16> to vector<64x64xbf16>
    %c7 = arith.constant 7 : index
    %c0_56 = arith.constant 0 : index
    %145 = vector.load %arg5[%c7, %c0_56] : memref<9x1536xf32, #tpu.memory_space<vmem>>, vector<1x64xf32>
    %146 = arith.truncf %142 : vector<2x64xf32> to vector<2x64xbf16>
    %cst_57 = arith.constant dense<0.000000e+00> : vector<2x64xf32>
    %147 = tpu.matmul %146, %144, %cst_57 {dimension_numbers = #tpu.dot_dimension_numbers<[1], [0], [0], [1], [0, 0, 1, 1], [], []>} : vector<2x64xbf16>, vector<64x64xbf16>, vector<2x64xf32> -> vector<2x64xf32>
    %148 = vector.broadcast %145 : vector<1x64xf32> to vector<2x64xf32>
    %149 = arith.addf %147, %148 : vector<2x64xf32>
    %150 = arith.negf %149 : vector<2x64xf32>
    %151 = math.exp %150 : vector<2x64xf32>
    %cst_58 = arith.constant 1.000000e+00 : f32
    %152 = vector.broadcast %cst_58 : f32 to vector<2x64xf32>
    %153 = arith.addf %152, %151 : vector<2x64xf32>
    %154 = arith.divf %152, %153 : vector<2x64xf32>
    %cst_59 = arith.constant 0.000000e+00 : f32
    %155 = vector.broadcast %cst_59 : f32 to vector<2x64xf32>
    %156 = vector.broadcast %60 : f32 to vector<2x64xf32>
    %157 = arith.addf %155, %156 : vector<2x64xf32>
    %158 = tpu.concatenate %154, %157 in 1 : vector<2x64xf32>, vector<2x64xf32> -> vector<2x128xf32>
    %c0_60 = arith.constant 0 : index
    %c0_61 = arith.constant 0 : index
    %159 = vector.load %arg6[%c0_60, %c0_61] : memref<2x128xf32, #tpu.memory_space<vmem>>, vector<2x128xf32>
    tpu.vector_store %arg6[%c0_60, %c0_61], %158 {strides = array<i32>} : memref<2x128xf32, #tpu.memory_space<vmem>>, vector<2x128xf32>,
    return
  }
}

</mosaic_0001>

<llo_original>
// kernel: convnet_forward.1
$region0: #{convnet_forward.1}
  #allocation0 [shape = 'u32[]', space=smem, size = 0x4, offset = 0x4, fixed_abs, tag = 'smem constant byte address 0x4 - core index']
  #allocation1 [shape = 'u32[72,128]{1,0:T(1,128)}', space=vmem, size = 0x9000, scoped, tag = 'internal scratch']
  %s0 = inlined_call_operand.vmem [shape: f32[2,64], index: 0, kind: input, shape index: {}]
  %s1 = inlined_call_operand.vmem [shape: f32[2,8], index: 1, kind: input, shape index: {}]
  %s2 = inlined_call_operand.vmem [shape: bf16[6,64,64], index: 2, kind: input, shape index: {}]
  %s3 = inlined_call_operand.vmem [shape: bf16[80,1536], index: 3, kind: input, shape index: {}]
  %s4 = inlined_call_operand.vmem [shape: bf16[1536,80], index: 4, kind: input, shape index: {}]
  %s5 = inlined_call_operand.vmem [shape: f32[9,1536], index: 5, kind: input, shape index: {}]
  %s6 = inlined_call_operand.vmem [shape: f32[2,128], index: 6, kind: output, shape index: {}]
  %s7 = sld [smem:[#allocation0]]
  $region34: #{convnet_forward.1} parent=0
    _
  %s9 = ssub.s32 1, %s7
  %s10 = scalar_select 0, %s9, %s7
  // Predicated region
  $region2: #{convnet_forward.1} parent=0 // pred_check
    _
  $region3: #{convnet_forward.1} parent=0 // pred_check_branch
    %12 = sbr.rel (0) target = $region5
  $region4: #{convnet_forward.1} parent=0 // pred_region
    _
  $region5: #{convnet_forward.1} parent=0 // pred_fallthru
    _
  // Predicated region
  $region6: #{convnet_forward.1} parent=0 // pred_check
    _
  $region7: #{convnet_forward.1} parent=0 // pred_check_branch
    %14 = sbr.rel (0) target = $region9
  $region8: #{convnet_forward.1} parent=0 // pred_region
    _
  $region9: #{convnet_forward.1} parent=0 // pred_fallthru
    _
  // Predicated region
  $region10: #{convnet_forward.1} parent=0 // pred_check
    _
  $region11: #{convnet_forward.1} parent=0 // pred_check_branch
    %16 = sbr.rel (0) target = $region13
  $region12: #{convnet_forward.1} parent=0 // pred_region
    _
  $region13: #{convnet_forward.1} parent=0 // pred_fallthru
    _
  // Predicated region
  $region14: #{convnet_forward.1} parent=0 // pred_check
    _
  $region15: #{convnet_forward.1} parent=0 // pred_check_branch
    %18 = sbr.rel (0) target = $region17
  $region16: #{convnet_forward.1} parent=0 // pred_region
    _
  $region17: #{convnet_forward.1} parent=0 // pred_fallthru
    _
  // Predicated region
  $region18: #{convnet_forward.1} parent=0 // pred_check
    _
  $region19: #{convnet_forward.1} parent=0 // pred_check_branch
    %20 = sbr.rel (0) target = $region21
  $region20: #{convnet_forward.1} parent=0 // pred_region
    _
  $region21: #{convnet_forward.1} parent=0 // pred_fallthru
    _
  // Predicated region
  $region22: #{convnet_forward.1} parent=0 // pred_check
    _
  $region23: #{convnet_forward.1} parent=0 // pred_check_branch
    %22 = sbr.rel (0) target = $region25
  $region24: #{convnet_forward.1} parent=0 // pred_region
    _
  $region25: #{convnet_forward.1} parent=0 // pred_fallthru
    _
  %v24 = vld [vmem:[%s4] sm:$0xf]
  %v25 = vld [vmem:[%s4 + $0x4] sm:$0xf]
  %v26 = vld [vmem:[%s4 + $0x8] sm:$0xf]
  %v27 = vld [vmem:[%s4 + $0xc] sm:$0xf]
  %v28 = vld [vmem:[%s4 + $0x10] sm:$0xf]
  %v29 = vld [vmem:[%s4 + $0x14] sm:$0xf]
  %v30 = vld [vmem:[%s4 + $0x18] sm:$0xf]
  %v31 = vld [vmem:[%s4 + $0x1c] sm:$0xf]
  %v32 = vld [vmem:[%s4 + $0x20] sm:$0xf]
  %v33 = vld [vmem:[%s4 + $0x24] sm:$0xf]
  %v34 = vld [vmem:[%s4 + $0x28] sm:$0xf]
  %v35 = vld [vmem:[%s4 + $0x2c] sm:$0xf]
  %v36 = vld [vmem:[%s4 + $0x30] sm:$0xf]
  %v37 = vld [vmem:[%s4 + $0x34] sm:$0xf]
  %v38 = vld [vmem:[%s4 + $0x38] sm:$0xf]
  %v39 = vld [vmem:[%s4 + $0x3c] sm:$0xf]
  %v40 = vld [vmem:[%s4 + $0x40] sm:$0xf]
  %v41 = vld [vmem:[%s4 + $0x44] sm:$0xf]
  %v42 = vld [vmem:[%s4 + $0x48] sm:$0xf]
  %v43 = vld [vmem:[%s4 + $0x4c] sm:$0xf]
  %v44 = vld [vmem:[%s4 + $0x50] sm:$0xf]
  %v45 = vld [vmem:[%s4 + $0x54] sm:$0xf]
  %v46 = vld [vmem:[%s4 + $0x58] sm:$0xf]
  %v47 = vld [vmem:[%s4 + $0x5c] sm:$0xf]
  %v48 = vld [vmem:[%s4 + $0x60] sm:$0xf]
  %v49 = vld [vmem:[%s4 + $0x64] sm:$0xf]
  %v50 = vld [vmem:[%s4 + $0x68] sm:$0xf]
  %v51 = vld [vmem:[%s4 + $0x6c] sm:$0xf]
  %v52 = vld [vmem:[%s4 + $0x70] sm:$0xf]
  %v53 = vld [vmem:[%s4 + $0x74] sm:$0xf]
  %v54 = vld [vmem:[%s4 + $0x78] sm:$0xf]
  %v55 = vld [vmem:[%s4 + $0x7c] sm:$0xf]
  %v56 = vld [vmem:[%s4 + $0x80] sm:$0xf]
  %v57 = vld [vmem:[%s4 + $0x84] sm:$0xf]
  %v58 = vld [vmem:[%s4 + $0x88] sm:$0xf]
  %v59 = vld [vmem:[%s4 + $0x8c] sm:$0xf]
  %v60 = vld [vmem:[%s4 + $0x90] sm:$0xf]
  %v61 = vld [vmem:[%s4 + $0x94] sm:$0xf]
  %v62 = vld [vmem:[%s4 + $0x98] sm:$0xf]
  %v63 = vld [vmem:[%s4 + $0x9c] sm:$0xf]
  %v64 = vld [vmem:[%s4 + $0xa0] sm:$0xf]
  %v65 = vld [vmem:[%s4 + $0xa4] sm:$0xf]
  %v66 = vld [vmem:[%s4 + $0xa8] sm:$0xf]
  %v67 = vld [vmem:[%s4 + $0xac] sm:$0xf]
  %v68 = vld [vmem:[%s4 + $0xb0] sm:$0xf]
  %v69 = vld [vmem:[%s4 + $0xb4] sm:$0xf]
  %v70 = vld [vmem:[%s4 + $0xb8] sm:$0xf]
  %v71 = vld [vmem:[%s4 + $0xbc] sm:$0xf]
  %v72 = vld [vmem:[%s4 + $0xc0] sm:$0xf]
  %v73 = vld [vmem:[%s4 + $0xc4] sm:$0xf]
  %v74 = vld [vmem:[%s4 + $0xc8] sm:$0xf]
  %v75 = vld [vmem:[%s4 + $0xcc] sm:$0xf]
  %v76 = vld [vmem:[%s4 + $0xd0] sm:$0xf]
  %v77 = vld [vmem:[%s4 + $0xd4] sm:$0xf]
  %v78 = vld [vmem:[%s4 + $0xd8] sm:$0xf]
  %v79 = vld [vmem:[%s4 + $0xdc] sm:$0xf]
  %v80 = vld [vmem:[%s4 + $0xe0] sm:$0xf]
  %v81 = vld [vmem:[%s4 + $0xe4] sm:$0xf]
  %v82 = vld [vmem:[%s4 + $0xe8] sm:$0xf]
  %v83 = vld [vmem:[%s4 + $0xec] sm:$0xf]
  %v84 = vld [vmem:[%s4 + $0xf0] sm:$0xf]
  %v85 = vld [vmem:[%s4 + $0xf4] sm:$0xf]
  %v86 = vld [vmem:[%s4 + $0xf8] sm:$0xf]
  %v87 = vld [vmem:[%s4 + $0xfc] sm:$0xf]
  %v88 = vld [vmem:[%s4 + $0x100] sm:$0xf]
  %v89 = vld [vmem:[%s4 + $0x104] sm:$0xf]
  %v90 = vld [vmem:[%s4 + $0x108] sm:$0xf]
  %v91 = vld [vmem:[%s4 + $0x10c] sm:$0xf]
  %v92 = vld [vmem:[%s4 + $0x110] sm:$0xf]
  %v93 = vld [vmem:[%s4 + $0x114] sm:$0xf]
  %v94 = vld [vmem:[%s4 + $0x118] sm:$0xf]
  %v95 = vld [vmem:[%s4 + $0x11c] sm:$0xf]
  %v96 = vld [vmem:[%s4 + $0x120] sm:$0xf]
  %v97 = vld [vmem:[%s4 + $0x124] sm:$0xf]
  %v98 = vld [vmem:[%s4 + $0x128] sm:$0xf]
  %v99 = vld [vmem:[%s4 + $0x12c] sm:$0xf]
  %v100 = vld [vmem:[%s4 + $0x130] sm:$0xf]
  %v101 = vld [vmem:[%s4 + $0x134] sm:$0xf]
  %v102 = vld [vmem:[%s4 + $0x138] sm:$0xf]
  %v103 = vld [vmem:[%s4 + $0x13c] sm:$0xf]
  %v104 = vld [vmem:[%s4 + $0x140] sm:$0xf]
  %v105 = vld [vmem:[%s4 + $0x144] sm:$0xf]
  %v106 = vld [vmem:[%s4 + $0x148] sm:$0xf]
  %v107 = vld [vmem:[%s4 + $0x14c] sm:$0xf]
  %v108 = vld [vmem:[%s4 + $0x150] sm:$0xf]
  %v109 = vld [vmem:[%s4 + $0x154] sm:$0xf]
  %v110 = vld [vmem:[%s4 + $0x158] sm:$0xf]
  %v111 = vld [vmem:[%s4 + $0x15c] sm:$0xf]
  %v112 = vld [vmem:[%s4 + $0x160] sm:$0xf]
  %v113 = vld [vmem:[%s4 + $0x164] sm:$0xf]
  %v114 = vld [vmem:[%s4 + $0x168] sm:$0xf]
  %v115 = vld [vmem:[%s4 + $0x16c] sm:$0xf]
  %v116 = vld [vmem:[%s4 + $0x170] sm:$0xf]
  %v117 = vld [vmem:[%s4 + $0x174] sm:$0xf]
  %v118 = vld [vmem:[%s4 + $0x178] sm:$0xf]
  %v119 = vld [vmem:[%s4 + $0x17c] sm:$0xf]
  %v120 = vld [vmem:[%s4 + $0x180] sm:$0xf]
  %v121 = vld [vmem:[%s4 + $0x184] sm:$0xf]
  %v122 = vld [vmem:[%s4 + $0x188] sm:$0xf]
  %v123 = vld [vmem:[%s4 + $0x18c] sm:$0xf]
  %v124 = vld [vmem:[%s4 + $0x190] sm:$0xf]
  %v125 = vld [vmem:[%s4 + $0x194] sm:$0xf]
  %v126 = vld [vmem:[%s4 + $0x198] sm:$0xf]
  %v127 = vld [vmem:[%s4 + $0x19c] sm:$0xf]
  %v128 = vld [vmem:[%s4 + $0x1a0] sm:$0xf]
  %v129 = vld [vmem:[%s4 + $0x1a4] sm:$0xf]
  %v130 = vld [vmem:[%s4 + $0x1a8] sm:$0xf]
  %v131 = vld [vmem:[%s4 + $0x1ac] sm:$0xf]
  %v132 = vld [vmem:[%s4 + $0x1b0] sm:$0xf]
  %v133 = vld [vmem:[%s4 + $0x1b4] sm:$0xf]
  %v134 = vld [vmem:[%s4 + $0x1b8] sm:$0xf]
  %v135 = vld [vmem:[%s4 + $0x1bc] sm:$0xf]
  %v136 = vld [vmem:[%s4 + $0x1c0] sm:$0xf]
  %v137 = vld [vmem:[%s4 + $0x1c4] sm:$0xf]
  %v138 = vld [vmem:[%s4 + $0x1c8] sm:$0xf]
  %v139 = vld [vmem:[%s4 + $0x1cc] sm:$0xf]
  %v140 = vld [vmem:[%s4 + $0x1d0] sm:$0xf]
  %v141 = vld [vmem:[%s4 + $0x1d4] sm:$0xf]
  %v142 = vld [vmem:[%s4 + $0x1d8] sm:$0xf]
  %v143 = vld [vmem:[%s4 + $0x1dc] sm:$0xf]
  %v144 = vld [vmem:[%s4 + $0x1e0] sm:$0xf]
  %v145 = vld [vmem:[%s4 + $0x1e4] sm:$0xf]
  %v146 = vld [vmem:[%s4 + $0x1e8] sm:$0xf]
  %v147 = vld [vmem:[%s4 + $0x1ec] sm:$0xf]
  %v148 = vld [vmem:[%s4 + $0x1f0] sm:$0xf]
  %v149 = vld [vmem:[%s4 + $0x1f4] sm:$0xf]
  %v150 = vld [vmem:[%s4 + $0x1f8] sm:$0xf]
  %v151 = vld [vmem:[%s4 + $0x1fc] sm:$0xf]
  %v152 = vld [vmem:[%s4 + $0x200] sm:$0xf]
  %v153 = vld [vmem:[%s4 + $0x204] sm:$0xf]
  %v154 = vld [vmem:[%s4 + $0x208] sm:$0xf]
  %v155 = vld [vmem:[%s4 + $0x20c] sm:$0xf]
  %v156 = vld [vmem:[%s4 + $0x210] sm:$0xf]
  %v157 = vld [vmem:[%s4 + $0x214] sm:$0xf]
  %v158 = vld [vmem:[%s4 + $0x218] sm:$0xf]
  %v159 = vld [vmem:[%s4 + $0x21c] sm:$0xf]
  %v160 = vld [vmem:[%s4 + $0x220] sm:$0xf]
  %v161 = vld [vmem:[%s4 + $0x224] sm:$0xf]
  %v162 = vld [vmem:[%s4 + $0x228] sm:$0xf]
  %v163 = vld [vmem:[%s4 + $0x22c] sm:$0xf]
  %v164 = vld [vmem:[%s4 + $0x230] sm:$0xf]
  %v165 = vld [vmem:[%s4 + $0x234] sm:$0xf]
  %v166 = vld [vmem:[%s4 + $0x238] sm:$0xf]
  %v167 = vld [vmem:[%s4 + $0x23c] sm:$0xf]
  %v168 = vld [vmem:[%s4 + $0x240] sm:$0xf]
  %v169 = vld [vmem:[%s4 + $0x244] sm:$0xf]
  %v170 = vld [vmem:[%s4 + $0x248] sm:$0xf]
  %v171 = vld [vmem:[%s4 + $0x24c] sm:$0xf]
  %v172 = vld [vmem:[%s4 + $0x250] sm:$0xf]
  %v173 = vld [vmem:[%s4 + $0x254] sm:$0xf]
  %v174 = vld [vmem:[%s4 + $0x258] sm:$0xf]
  %v175 = vld [vmem:[%s4 + $0x25c] sm:$0xf]
  %v176 = vld [vmem:[%s4 + $0x260] sm:$0xf]
  %v177 = vld [vmem:[%s4 + $0x264] sm:$0xf]
  %v178 = vld [vmem:[%s4 + $0x268] sm:$0xf]
  %v179 = vld [vmem:[%s4 + $0x26c] sm:$0xf]
  %v180 = vld [vmem:[%s4 + $0x270] sm:$0xf]
  %v181 = vld [vmem:[%s4 + $0x274] sm:$0xf]
  %v182 = vld [vmem:[%s4 + $0x278] sm:$0xf]
  %v183 = vld [vmem:[%s4 + $0x27c] sm:$0xf]
  %v184 = vld [vmem:[%s4 + $0x280] sm:$0xf]
  %v185 = vld [vmem:[%s4 + $0x284] sm:$0xf]
  %v186 = vld [vmem:[%s4 + $0x288] sm:$0xf]
  %v187 = vld [vmem:[%s4 + $0x28c] sm:$0xf]
  %v188 = vld [vmem:[%s4 + $0x290] sm:$0xf]
  %v189 = vld [vmem:[%s4 + $0x294] sm:$0xf]
  %v190 = vld [vmem:[%s4 + $0x298] sm:$0xf]
  %v191 = vld [vmem:[%s4 + $0x29c] sm:$0xf]
  %v192 = vld [vmem:[%s4 + $0x2a0] sm:$0xf]
  %v193 = vld [vmem:[%s4 + $0x2a4] sm:$0xf]
  %v194 = vld [vmem:[%s4 + $0x2a8] sm:$0xf]
  %v195 = vld [vmem:[%s4 + $0x2ac] sm:$0xf]
  %v196 = vld [vmem:[%s4 + $0x2b0] sm:$0xf]
  %v197 = vld [vmem:[%s4 + $0x2b4] sm:$0xf]
  %v198 = vld [vmem:[%s4 + $0x2b8] sm:$0xf]
  %v199 = vld [vmem:[%s4 + $0x2bc] sm:$0xf]
  %v200 = vld [vmem:[%s4 + $0x2c0] sm:$0xf]
  %v201 = vld [vmem:[%s4 + $0x2c4] sm:$0xf]
  %v202 = vld [vmem:[%s4 + $0x2c8] sm:$0xf]
  %v203 = vld [vmem:[%s4 + $0x2cc] sm:$0xf]
  %v204 = vld [vmem:[%s4 + $0x2d0] sm:$0xf]
  %v205 = vld [vmem:[%s4 + $0x2d4] sm:$0xf]
  %v206 = vld [vmem:[%s4 + $0x2d8] sm:$0xf]
  %v207 = vld [vmem:[%s4 + $0x2dc] sm:$0xf]
  %v208 = vld [vmem:[%s4 + $0x2e0] sm:$0xf]
  %v209 = vld [vmem:[%s4 + $0x2e4] sm:$0xf]
  %v210 = vld [vmem:[%s4 + $0x2e8] sm:$0xf]
  %v211 = vld [vmem:[%s4 + $0x2ec] sm:$0xf]
  %v212 = vld [vmem:[%s4 + $0x2f0] sm:$0xf]
  %v213 = vld [vmem:[%s4 + $0x2f4] sm:$0xf]
  %v214 = vld [vmem:[%s4 + $0x2f8] sm:$0xf]
  %v215 = vld [vmem:[%s4 + $0x2fc] sm:$0xf]
  %v216 = vld [vmem:[%s5 + $0x60] ss:$0 sm:$0xff]
  %v217 = vld [vmem:[%s0] sm:$0x3]
  %v218 = vld [vmem:[%s2] sm:$0xf]
  %v219 = vld [vmem:[%s2 + $0x4] sm:$0xf]
  %v220 = vld [vmem:[%s2 + $0x8] sm:$0xf]
  %v221 = vld [vmem:[%s2 + $0xc] sm:$0xf]
  %v222 = vld [vmem:[%s2 + $0x10] sm:$0xf]
  %v223 = vld [vmem:[%s2 + $0x14] sm:$0xf]
  %v224 = vld [vmem:[%s2 + $0x18] sm:$0xf]
  %v225 = vld [vmem:[%s2 + $0x1c] sm:$0xf]
  %v226 = vld [vmem:[%s5 + $0x2] ss:$0 sm:$0xff]
  %v227 = vpack.c.bf16 %v217, %v217
  %v236 = vunpack.c.l.b16 %v218
  %v237 = vunpack.c.l.b16 %v219
  %v238 = vunpack.c.l.b16 %v220
  %v239 = vunpack.c.l.b16 %v221
  %v240 = vunpack.c.l.b16 %v222
  %v241 = vunpack.c.l.b16 %v223
  %v242 = vunpack.c.l.b16 %v224
  %v243 = vunpack.c.l.b16 %v225
  %v244 = vpack.c.b16 %v237, %v236
  %v245 = vpack.c.b16 %v239, %v238
  %v246 = vpack.c.b16 %v241, %v240
  %v247 = vpack.c.b16 %v243, %v242
  %vm252 = vcmask 523264
  %v254 = vsel %vm252, %v227, 0
  %256 = vmatpush.bf16.msra.mxu0 0
  %257 = vmatpush.bf16.msra.mxu0 0
  %258 = vmatpush.bf16.msra.mxu0 0
  %259 = vmatpush.bf16.msra.mxu0 0
  %260 = vmatpush.bf16.msra.mxu0 %v247
  %261 = vmatpush.bf16.msra.mxu0 %v246
  %262 = vmatpush.bf16.msra.mxu0 %v245
  %263 = vmatpush.bf16.msra.mxu0 %v244
  %264 = vmatmul.bf16.gmra.mxu0 %v254
  %v265 = vpop.f32.mrf.mxu0
  %v266 = vadd.f32 %v226, %v265
  %v267 = vpop.f32.mrf.mxu0
  %268 = vdwg.mxu0
  %v269 = vmax.f32 %v266, 0.0
  %s270 = scalar_lea.vmem %s2, 32
  %v271 = vld [vmem:[%s270] sm:$0xf]
  %v272 = vld [vmem:[%s270 + $0x4] sm:$0xf]
  %v273 = vld [vmem:[%s270 + $0x8] sm:$0xf]
  %v274 = vld [vmem:[%s270 + $0xc] sm:$0xf]
  %v275 = vld [vmem:[%s270 + $0x10] sm:$0xf]
  %v276 = vld [vmem:[%s270 + $0x14] sm:$0xf]
  %v277 = vld [vmem:[%s270 + $0x18] sm:$0xf]
  %v278 = vld [vmem:[%s270 + $0x1c] sm:$0xf]
  %v279 = vld [vmem:[%s5 + $0x3] ss:$0 sm:$0xff]
  %v280 = vpack.c.bf16 %v269, %v269
  %v289 = vunpack.c.l.b16 %v271
  %v290 = vunpack.c.l.b16 %v272
  %v291 = vunpack.c.l.b16 %v273
  %v292 = vunpack.c.l.b16 %v274
  %v293 = vunpack.c.l.b16 %v275
  %v294 = vunpack.c.l.b16 %v276
  %v295 = vunpack.c.l.b16 %v277
  %v296 = vunpack.c.l.b16 %v278
  %v297 = vpack.c.b16 %v290, %v289
  %v298 = vpack.c.b16 %v292, %v291
  %v299 = vpack.c.b16 %v294, %v293
  %v300 = vpack.c.b16 %v296, %v295
  %v306 = vsel %vm252, %v280, 0
  %308 = vmatpush.bf16.msra.mxu0 0
  %309 = vmatpush.bf16.msra.mxu0 0
  %310 = vmatpush.bf16.msra.mxu0 0
  %311 = vmatpush.bf16.msra.mxu0 0
  %312 = vmatpush.bf16.msra.mxu0 %v300
  %313 = vmatpush.bf16.msra.mxu0 %v299
  %314 = vmatpush.bf16.msra.mxu0 %v298
  %315 = vmatpush.bf16.msra.mxu0 %v297
  %316 = vmatmul.bf16.gmra.mxu0 %v306
  %v317 = vpop.f32.mrf.mxu0
  %v318 = vadd.f32 %v279, %v317
  %v319 = vpop.f32.mrf.mxu0
  %320 = vdwg.mxu0
  %v321 = vmax.f32 %v318, 0.0
  %s322 = scalar_lea.vmem %s2, 64
  %v323 = vld [vmem:[%s322] sm:$0xf]
  %v324 = vld [vmem:[%s322 + $0x4] sm:$0xf]
  %v325 = vld [vmem:[%s322 + $0x8] sm:$0xf]
  %v326 = vld [vmem:[%s322 + $0xc] sm:$0xf]
  %v327 = vld [vmem:[%s322 + $0x10] sm:$0xf]
  %v328 = vld [vmem:[%s322 + $0x14] sm:$0xf]
  %v329 = vld [vmem:[%s322 + $0x18] sm:$0xf]
  %v330 = vld [vmem:[%s322 + $0x1c] sm:$0xf]
  %v331 = vld [vmem:[%s5 + $0x4] ss:$0 sm:$0xff]
  %v332 = vpack.c.bf16 %v321, %v321
  %v341 = vunpack.c.l.b16 %v323
  %v342 = vunpack.c.l.b16 %v324
  %v343 = vunpack.c.l.b16 %v325
  %v344 = vunpack.c.l.b16 %v326
  %v345 = vunpack.c.l.b16 %v327
  %v346 = vunpack.c.l.b16 %v328
  %v347 = vunpack.c.l.b16 %v329
  %v348 = vunpack.c.l.b16 %v330
  %v349 = vpack.c.b16 %v342, %v341
  %v350 = vpack.c.b16 %v344, %v343
  %v351 = vpack.c.b16 %v346, %v345
  %v352 = vpack.c.b16 %v348, %v347
  %v358 = vsel %vm252, %v332, 0
  %360 = vmatpush.bf16.msra.mxu0 0
  %361 = vmatpush.bf16.msra.mxu0 0
  %362 = vmatpush.bf16.msra.mxu0 0
  %363 = vmatpush.bf16.msra.mxu0 0
  %364 = vmatpush.bf16.msra.mxu0 %v352
  %365 = vmatpush.bf16.msra.mxu0 %v351
  %366 = vmatpush.bf16.msra.mxu0 %v350
  %367 = vmatpush.bf16.msra.mxu0 %v349
  %368 = vmatmul.bf16.gmra.mxu0 %v358
  %v369 = vpop.f32.mrf.mxu0
  %v370 = vadd.f32 %v331, %v369
  %v371 = vpop.f32.mrf.mxu0
  %372 = vdwg.mxu0
  %v373 = vmax.f32 %v370, 0.0
  %v374 = vpack.c.bf16 %v373, %v373
  %v375 = vld [vmem:[%s3] sm:$0xff]
  %v376 = vld [vmem:[%s3 + $0x8] sm:$0xff]
  %v377 = vld [vmem:[%s3 + $0x10] sm:$0xff]
  %v378 = vld [vmem:[%s3 + $0x18] sm:$0xff]
  %v379 = vld [vmem:[%s3 + $0x20] sm:$0xff]
  %v380 = vld [vmem:[%s3 + $0x28] sm:$0xff]
  %v381 = vld [vmem:[%s3 + $0x30] sm:$0xff]
  %v382 = vld [vmem:[%s3 + $0x38] sm:$0xff]
  %v383 = vld [vmem:[%s3 + $0x40] sm:$0xff]
  %v384 = vld [vmem:[%s3 + $0x48] sm:$0xff]
  %v385 = vld [vmem:[%s3 + $0x50] sm:$0xff]
  %v386 = vld [vmem:[%s3 + $0x58] sm:$0xff]
  %v387 = vld [vmem:[%s3 + $0x60] sm:$0xff]
  %v388 = vld [vmem:[%s3 + $0x68] sm:$0xff]
  %v389 = vld [vmem:[%s3 + $0x70] sm:$0xff]
  %v390 = vld [vmem:[%s3 + $0x78] sm:$0xff]
  %v391 = vld [vmem:[%s3 + $0x80] sm:$0xff]
  %v392 = vld [vmem:[%s3 + $0x88] sm:$0xff]
  %v393 = vld [vmem:[%s3 + $0x90] sm:$0xff]
  %v394 = vld [vmem:[%s3 + $0x98] sm:$0xff]
  %v395 = vld [vmem:[%s3 + $0xa0] sm:$0xff]
  %v396 = vld [vmem:[%s3 + $0xa8] sm:$0xff]
  %v397 = vld [vmem:[%s3 + $0xb0] sm:$0xff]
  %v398 = vld [vmem:[%s3 + $0xb8] sm:$0xff]
  %v399 = vld [vmem:[%s3 + $0xc0] sm:$0xff]
  %v400 = vld [vmem:[%s3 + $0xc8] sm:$0xff]
  %v401 = vld [vmem:[%s3 + $0xd0] sm:$0xff]
  %v402 = vld [vmem:[%s3 + $0xd8] sm:$0xff]
  %v403 = vld [vmem:[%s3 + $0xe0] sm:$0xff]
  %v404 = vld [vmem:[%s3 + $0xe8] sm:$0xff]
  %v405 = vld [vmem:[%s3 + $0xf0] sm:$0xff]
  %v406 = vld [vmem:[%s3 + $0xf8] sm:$0xff]
  %v407 = vld [vmem:[%s3 + $0x100] sm:$0xff]
  %v408 = vld [vmem:[%s3 + $0x108] sm:$0xff]
  %v409 = vld [vmem:[%s3 + $0x110] sm:$0xff]
  %v410 = vld [vmem:[%s3 + $0x118] sm:$0xff]
  %v411 = vld [vmem:[%s3 + $0x120] sm:$0xff]
  %v412 = vld [vmem:[%s3 + $0x128] sm:$0xff]
  %v413 = vld [vmem:[%s3 + $0x130] sm:$0xff]
  %v414 = vld [vmem:[%s3 + $0x138] sm:$0xff]
  %v415 = vld [vmem:[%s3 + $0x140] sm:$0xff]
  %v416 = vld [vmem:[%s3 + $0x148] sm:$0xff]
  %v417 = vld [vmem:[%s3 + $0x150] sm:$0xff]
  %v418 = vld [vmem:[%s3 + $0x158] sm:$0xff]
  %v419 = vld [vmem:[%s3 + $0x160] sm:$0xff]
  %v420 = vld [vmem:[%s3 + $0x168] sm:$0xff]
  %v421 = vld [vmem:[%s3 + $0x170] sm:$0xff]
  %v422 = vld [vmem:[%s3 + $0x178] sm:$0xff]
  %v423 = vld [vmem:[%s5] ss:$8 sm:$0xf]
  %v424 = vld [vmem:[%s5] ss:$8 sm:$0xf0]
  %v425 = vor.u32 %v423, %v424
  %s426 = scalar_lea.vmem %s5, 64
  %v427 = vld [vmem:[%s426] ss:$8 sm:$0xf]
  %v430 = vperm.slane %v425, 0
  %v431 = vperm.slane %v425, 1
  %v432 = vperm.slane %v425, 2
  %v433 = vperm.slane %v425, 3
  %v434 = vperm.slane %v425, 4
  %v435 = vperm.slane %v425, 5
  %v436 = vperm.slane %v425, 6
  %v437 = vperm.slane %v425, 7
  %v438 = vperm.slane %v427, 0
  %v439 = vperm.slane %v427, 1
  %v440 = vperm.slane %v427, 2
  %v441 = vperm.slane %v427, 3
  %v502 = vunpack.c.l.b16 %v375
  %v503 = vunpack.c.h.b16 %v375
  %v504 = vunpack.c.l.b16 %v376
  %v505 = vunpack.c.h.b16 %v376
  %v506 = vunpack.c.l.b16 %v377
  %v507 = vunpack.c.h.b16 %v377
  %v508 = vunpack.c.l.b16 %v378
  %v509 = vunpack.c.h.b16 %v378
  %v510 = vunpack.c.l.b16 %v379
  %v511 = vunpack.c.h.b16 %v379
  %v512 = vunpack.c.l.b16 %v380
  %v513 = vunpack.c.h.b16 %v380
  %v514 = vunpack.c.l.b16 %v381
  %v515 = vunpack.c.h.b16 %v381
  %v516 = vunpack.c.l.b16 %v382
  %v517 = vunpack.c.h.b16 %v382
  %v518 = vunpack.c.l.b16 %v383
  %v519 = vunpack.c.h.b16 %v383
  %v520 = vunpack.c.l.b16 %v384
  %v521 = vunpack.c.h.b16 %v384
  %v522 = vunpack.c.l.b16 %v385
  %v523 = vunpack.c.h.b16 %v385
  %v524 = vunpack.c.l.b16 %v386
  %v525 = vunpack.c.h.b16 %v386
  %v526 = vunpack.c.l.b16 %v387
  %v527 = vunpack.c.h.b16 %v387
  %v528 = vunpack.c.l.b16 %v388
  %v529 = vunpack.c.h.b16 %v388
  %v530 = vunpack.c.l.b16 %v389
  %v531 = vunpack.c.h.b16 %v389
  %v532 = vunpack.c.l.b16 %v390
  %v533 = vunpack.c.h.b16 %v390
  %v534 = vunpack.c.l.b16 %v391
  %v535 = vunpack.c.h.b16 %v391
  %v536 = vunpack.c.l.b16 %v392
  %v537 = vunpack.c.h.b16 %v392
  %v538 = vunpack.c.l.b16 %v393
  %v539 = vunpack.c.h.b16 %v393
  %v540 = vunpack.c.l.b16 %v394
  %v541 = vunpack.c.h.b16 %v394
  %v542 = vunpack.c.l.b16 %v395
  %v543 = vunpack.c.h.b16 %v395
  %v544 = vunpack.c.l.b16 %v396
  %v545 = vunpack.c.h.b16 %v396
  %v546 = vunpack.c.l.b16 %v397
  %v547 = vunpack.c.h.b16 %v397
  %v548 = vunpack.c.l.b16 %v398
  %v549 = vunpack.c.h.b16 %v398
  %v550 = vunpack.c.l.b16 %v399
  %v551 = vunpack.c.h.b16 %v399
  %v552 = vunpack.c.l.b16 %v400
  %v553 = vunpack.c.h.b16 %v400
  %v554 = vunpack.c.l.b16 %v401
  %v555 = vunpack.c.h.b16 %v401
  %v556 = vunpack.c.l.b16 %v402
  %v557 = vunpack.c.h.b16 %v402
  %v558 = vunpack.c.l.b16 %v403
  %v559 = vunpack.c.h.b16 %v403
  %v560 = vunpack.c.l.b16 %v404
  %v561 = vunpack.c.h.b16 %v404
  %v562 = vunpack.c.l.b16 %v405
  %v563 = vunpack.c.h.b16 %v405
  %v564 = vunpack.c.l.b16 %v406
  %v565 = vunpack.c.h.b16 %v406
  %v566 = vunpack.c.l.b16 %v407
  %v567 = vunpack.c.h.b16 %v407
  %v568 = vunpack.c.l.b16 %v408
  %v569 = vunpack.c.h.b16 %v408
  %v570 = vunpack.c.l.b16 %v409
  %v571 = vunpack.c.h.b16 %v409
  %v572 = vunpack.c.l.b16 %v410
  %v573 = vunpack.c.h.b16 %v410
  %v574 = vunpack.c.l.b16 %v411
  %v575 = vunpack.c.h.b16 %v411
  %v576 = vunpack.c.l.b16 %v412
  %v577 = vunpack.c.h.b16 %v412
  %v578 = vunpack.c.l.b16 %v413
  %v579 = vunpack.c.h.b16 %v413
  %v580 = vunpack.c.l.b16 %v414
  %v581 = vunpack.c.h.b16 %v414
  %v582 = vunpack.c.l.b16 %v415
  %v583 = vunpack.c.h.b16 %v415
  %v584 = vunpack.c.l.b16 %v416
  %v585 = vunpack.c.h.b16 %v416
  %v586 = vunpack.c.l.b16 %v417
  %v587 = vunpack.c.h.b16 %v417
  %v588 = vunpack.c.l.b16 %v418
  %v589 = vunpack.c.h.b16 %v418
  %v590 = vunpack.c.l.b16 %v419
  %v591 = vunpack.c.h.b16 %v419
  %v592 = vunpack.c.l.b16 %v420
  %v593 = vunpack.c.h.b16 %v420
  %v594 = vunpack.c.l.b16 %v421
  %v595 = vunpack.c.h.b16 %v421
  %v596 = vunpack.c.l.b16 %v422
  %v597 = vunpack.c.h.b16 %v422
  %v598 = vpack.c.b16 %v514, %v502
  %v599 = vpack.c.b16 %v515, %v503
  %v600 = vpack.c.b16 %v516, %v504
  %v601 = vpack.c.b16 %v517, %v505
  %v602 = vpack.c.b16 %v518, %v506
  %v603 = vpack.c.b16 %v519, %v507
  %v604 = vpack.c.b16 %v520, %v508
  %v605 = vpack.c.b16 %v521, %v509
  %v606 = vpack.c.b16 %v522, %v510
  %v607 = vpack.c.b16 %v523, %v511
  %v608 = vpack.c.b16 %v524, %v512
  %v609 = vpack.c.b16 %v525, %v513
  %v610 = vpack.c.b16 %v538, %v526
  %v611 = vpack.c.b16 %v539, %v527
  %v612 = vpack.c.b16 %v540, %v528
  %v613 = vpack.c.b16 %v541, %v529
  %v614 = vpack.c.b16 %v542, %v530
  %v615 = vpack.c.b16 %v543, %v531
  %v616 = vpack.c.b16 %v544, %v532
  %v617 = vpack.c.b16 %v545, %v533
  %v618 = vpack.c.b16 %v546, %v534
  %v619 = vpack.c.b16 %v547, %v535
  %v620 = vpack.c.b16 %v548, %v536
  %v621 = vpack.c.b16 %v549, %v537
  %v622 = vpack.c.b16 %v562, %v550
  %v623 = vpack.c.b16 %v563, %v551
  %v624 = vpack.c.b16 %v564, %v552
  %v625 = vpack.c.b16 %v565, %v553
  %v626 = vpack.c.b16 %v566, %v554
  %v627 = vpack.c.b16 %v567, %v555
  %v628 = vpack.c.b16 %v568, %v556
  %v629 = vpack.c.b16 %v569, %v557
  %v630 = vpack.c.b16 %v570, %v558
  %v631 = vpack.c.b16 %v571, %v559
  %v632 = vpack.c.b16 %v572, %v560
  %v633 = vpack.c.b16 %v573, %v561
  %v634 = vpack.c.b16 %v586, %v574
  %v635 = vpack.c.b16 %v587, %v575
  %v636 = vpack.c.b16 %v588, %v576
  %v637 = vpack.c.b16 %v589, %v577
  %v638 = vpack.c.b16 %v590, %v578
  %v639 = vpack.c.b16 %v591, %v579
  %v640 = vpack.c.b16 %v592, %v580
  %v641 = vpack.c.b16 %v593, %v581
  %v642 = vpack.c.b16 %v594, %v582
  %v643 = vpack.c.b16 %v595, %v583
  %v644 = vpack.c.b16 %v596, %v584
  %v645 = vpack.c.b16 %v597, %v585
  %v695 = vsel %vm252, %v374, 0
  %697 = vmatpush.bf16.msra.mxu0 0
  %698 = vmatpush.bf16.msra.mxu0 0
  %699 = vmatpush.bf16.msra.mxu0 0
  %700 = vmatpush.bf16.msra.mxu0 0
  %701 = vmatpush.bf16.msra.mxu0 %v634
  %702 = vmatpush.bf16.msra.mxu0 %v622
  %703 = vmatpush.bf16.msra.mxu0 %v610
  %704 = vmatpush.bf16.msra.mxu0 %v598
  %705 = vmatmul.bf16.gmra.mxu0 %v695
  %v706 = vpop.f32.mrf.mxu0
  %v707 = vadd.f32 %v430, %v706
  %v708 = vpop.f32.mrf.mxu0
  %709 = vdwg.mxu0
  %710 = vmatpush.bf16.msra.mxu0 0
  %711 = vmatpush.bf16.msra.mxu0 0
  %712 = vmatpush.bf16.msra.mxu0 0
  %713 = vmatpush.bf16.msra.mxu0 0
  %714 = vmatpush.bf16.msra.mxu0 %v635
  %715 = vmatpush.bf16.msra.mxu0 %v623
  %716 = vmatpush.bf16.msra.mxu0 %v611
  %717 = vmatpush.bf16.msra.mxu0 %v599
  %718 = vmatmul.bf16.gmra.mxu0 %v695
  %v719 = vpop.f32.mrf.mxu0
  %v720 = vadd.f32 %v431, %v719
  %v721 = vpop.f32.mrf.mxu0
  %722 = vdwg.mxu0
  %723 = vmatpush.bf16.msra.mxu0 0
  %724 = vmatpush.bf16.msra.mxu0 0
  %725 = vmatpush.bf16.msra.mxu0 0
  %726 = vmatpush.bf16.msra.mxu0 0
  %727 = vmatpush.bf16.msra.mxu0 %v636
  %728 = vmatpush.bf16.msra.mxu0 %v624
  %729 = vmatpush.bf16.msra.mxu0 %v612
  %730 = vmatpush.bf16.msra.mxu0 %v600
  %731 = vmatmul.bf16.gmra.mxu0 %v695
  %v732 = vpop.f32.mrf.mxu0
  %v733 = vadd.f32 %v432, %v732
  %v734 = vpop.f32.mrf.mxu0
  %735 = vdwg.mxu0
  %736 = vmatpush.bf16.msra.mxu0 0
  %737 = vmatpush.bf16.msra.mxu0 0
  %738 = vmatpush.bf16.msra.mxu0 0
  %739 = vmatpush.bf16.msra.mxu0 0
  %740 = vmatpush.bf16.msra.mxu0 %v637
  %741 = vmatpush.bf16.msra.mxu0 %v625
  %742 = vmatpush.bf16.msra.mxu0 %v613
  %743 = vmatpush.bf16.msra.mxu0 %v601
  %744 = vmatmul.bf16.gmra.mxu0 %v695
  %v745 = vpop.f32.mrf.mxu0
  %v746 = vadd.f32 %v433, %v745
  %v747 = vpop.f32.mrf.mxu0
  %748 = vdwg.mxu0
  %749 = vmatpush.bf16.msra.mxu0 0
  %750 = vmatpush.bf16.msra.mxu0 0
  %751 = vmatpush.bf16.msra.mxu0 0
  %752 = vmatpush.bf16.msra.mxu0 0
  %753 = vmatpush.bf16.msra.mxu0 %v638
  %754 = vmatpush.bf16.msra.mxu0 %v626
  %755 = vmatpush.bf16.msra.mxu0 %v614
  %756 = vmatpush.bf16.msra.mxu0 %v602
  %757 = vmatmul.bf16.gmra.mxu0 %v695
  %v758 = vpop.f32.mrf.mxu0
  %v759 = vadd.f32 %v434, %v758
  %v760 = vpop.f32.mrf.mxu0
  %761 = vdwg.mxu0
  %762 = vmatpush.bf16.msra.mxu0 0
  %763 = vmatpush.bf16.msra.mxu0 0
  %764 = vmatpush.bf16.msra.mxu0 0
  %765 = vmatpush.bf16.msra.mxu0 0
  %766 = vmatpush.bf16.msra.mxu0 %v639
  %767 = vmatpush.bf16.msra.mxu0 %v627
  %768 = vmatpush.bf16.msra.mxu0 %v615
  %769 = vmatpush.bf16.msra.mxu0 %v603
  %770 = vmatmul.bf16.gmra.mxu0 %v695
  %v771 = vpop.f32.mrf.mxu0
  %v772 = vadd.f32 %v435, %v771
  %v773 = vpop.f32.mrf.mxu0
  %774 = vdwg.mxu0
  %775 = vmatpush.bf16.msra.mxu0 0
  %776 = vmatpush.bf16.msra.mxu0 0
  %777 = vmatpush.bf16.msra.mxu0 0
  %778 = vmatpush.bf16.msra.mxu0 0
  %779 = vmatpush.bf16.msra.mxu0 %v640
  %780 = vmatpush.bf16.msra.mxu0 %v628
  %781 = vmatpush.bf16.msra.mxu0 %v616
  %782 = vmatpush.bf16.msra.mxu0 %v604
  %783 = vmatmul.bf16.gmra.mxu0 %v695
  %v784 = vpop.f32.mrf.mxu0
  %v785 = vadd.f32 %v436, %v784
  %v786 = vpop.f32.mrf.mxu0
  %787 = vdwg.mxu0
  %788 = vmatpush.bf16.msra.mxu0 0
  %789 = vmatpush.bf16.msra.mxu0 0
  %790 = vmatpush.bf16.msra.mxu0 0
  %791 = vmatpush.bf16.msra.mxu0 0
  %792 = vmatpush.bf16.msra.mxu0 %v641
  %793 = vmatpush.bf16.msra.mxu0 %v629
  %794 = vmatpush.bf16.msra.mxu0 %v617
  %795 = vmatpush.bf16.msra.mxu0 %v605
  %796 = vmatmul.bf16.gmra.mxu0 %v695
  %v797 = vpop.f32.mrf.mxu0
  %v798 = vadd.f32 %v437, %v797
  %v799 = vpop.f32.mrf.mxu0
  %800 = vdwg.mxu0
  %801 = vmatpush.bf16.msra.mxu0 0
  %802 = vmatpush.bf16.msra.mxu0 0
  %803 = vmatpush.bf16.msra.mxu0 0
  %804 = vmatpush.bf16.msra.mxu0 0
  %805 = vmatpush.bf16.msra.mxu0 %v642
  %806 = vmatpush.bf16.msra.mxu0 %v630
  %807 = vmatpush.bf16.msra.mxu0 %v618
  %808 = vmatpush.bf16.msra.mxu0 %v606
  %809 = vmatmul.bf16.gmra.mxu0 %v695
  %v810 = vpop.f32.mrf.mxu0
  %v811 = vadd.f32 %v438, %v810
  %v812 = vpop.f32.mrf.mxu0
  %813 = vdwg.mxu0
  %814 = vmatpush.bf16.msra.mxu0 0
  %815 = vmatpush.bf16.msra.mxu0 0
  %816 = vmatpush.bf16.msra.mxu0 0
  %817 = vmatpush.bf16.msra.mxu0 0
  %818 = vmatpush.bf16.msra.mxu0 %v643
  %819 = vmatpush.bf16.msra.mxu0 %v631
  %820 = vmatpush.bf16.msra.mxu0 %v619
  %821 = vmatpush.bf16.msra.mxu0 %v607
  %822 = vmatmul.bf16.gmra.mxu0 %v695
  %v823 = vpop.f32.mrf.mxu0
  %v824 = vadd.f32 %v439, %v823
  %v825 = vpop.f32.mrf.mxu0
  %826 = vdwg.mxu0
  %827 = vmatpush.bf16.msra.mxu0 0
  %828 = vmatpush.bf16.msra.mxu0 0
  %829 = vmatpush.bf16.msra.mxu0 0
  %830 = vmatpush.bf16.msra.mxu0 0
  %831 = vmatpush.bf16.msra.mxu0 %v644
  %832 = vmatpush.bf16.msra.mxu0 %v632
  %833 = vmatpush.bf16.msra.mxu0 %v620
  %834 = vmatpush.bf16.msra.mxu0 %v608
  %835 = vmatmul.bf16.gmra.mxu0 %v695
  %v836 = vpop.f32.mrf.mxu0
  %v837 = vadd.f32 %v440, %v836
  %v838 = vpop.f32.mrf.mxu0
  %839 = vdwg.mxu0
  %840 = vmatpush.bf16.msra.mxu0 0
  %841 = vmatpush.bf16.msra.mxu0 0
  %842 = vmatpush.bf16.msra.mxu0 0
  %843 = vmatpush.bf16.msra.mxu0 0
  %844 = vmatpush.bf16.msra.mxu0 %v645
  %845 = vmatpush.bf16.msra.mxu0 %v633
  %846 = vmatpush.bf16.msra.mxu0 %v621
  %847 = vmatpush.bf16.msra.mxu0 %v609
  %848 = vmatmul.bf16.gmra.mxu0 %v695
  %v849 = vpop.f32.mrf.mxu0
  %v850 = vadd.f32 %v441, %v849
  %v851 = vpop.f32.mrf.mxu0
  %852 = vdwg.mxu0
  %v853 = vmax.f32 %v707, 0.0
  %v854 = vmax.f32 %v720, 0.0
  %v855 = vmax.f32 %v733, 0.0
  %v856 = vmax.f32 %v746, 0.0
  %v857 = vmax.f32 %v759, 0.0
  %v858 = vmax.f32 %v772, 0.0
  %v859 = vmax.f32 %v785, 0.0
  %v860 = vmax.f32 %v798, 0.0
  %v861 = vmax.f32 %v811, 0.0
  %v862 = vmax.f32 %v824, 0.0
  %v863 = vmax.f32 %v837, 0.0
  %v864 = vmax.f32 %v850, 0.0
  %v865 = vpack.c.bf16 %v853, %v853
  %v866 = vpack.c.bf16 %v854, %v854
  %v867 = vpack.c.bf16 %v855, %v855
  %v868 = vpack.c.bf16 %v856, %v856
  %v869 = vpack.c.bf16 %v857, %v857
  %v870 = vpack.c.bf16 %v858, %v858
  %v871 = vpack.c.bf16 %v859, %v859
  %v872 = vpack.c.bf16 %v860, %v860
  %v873 = vpack.c.bf16 %v861, %v861
  %v874 = vpack.c.bf16 %v862, %v862
  %v875 = vpack.c.bf16 %v863, %v863
  %v876 = vpack.c.bf16 %v864, %v864
  %v1069 = vunpack.c.l.b16 %v24
  %v1070 = vunpack.c.l.b16 %v25
  %v1071 = vunpack.c.l.b16 %v26
  %v1072 = vunpack.c.l.b16 %v27
  %v1073 = vunpack.c.l.b16 %v28
  %v1074 = vunpack.c.l.b16 %v29
  %v1075 = vunpack.c.l.b16 %v30
  %v1076 = vunpack.c.l.b16 %v31
  %v1077 = vunpack.c.l.b16 %v32
  %v1078 = vunpack.c.l.b16 %v33
  %v1079 = vunpack.c.l.b16 %v34
  %v1080 = vunpack.c.l.b16 %v35
  %v1081 = vunpack.c.l.b16 %v36
  %v1082 = vunpack.c.l.b16 %v37
  %v1083 = vunpack.c.l.b16 %v38
  %v1084 = vunpack.c.l.b16 %v39
  %v1085 = vunpack.c.l.b16 %v40
  %v1086 = vunpack.c.l.b16 %v41
  %v1087 = vunpack.c.l.b16 %v42
  %v1088 = vunpack.c.l.b16 %v43
  %v1089 = vunpack.c.l.b16 %v44
  %v1090 = vunpack.c.l.b16 %v45
  %v1091 = vunpack.c.l.b16 %v46
  %v1092 = vunpack.c.l.b16 %v47
  %v1093 = vunpack.c.l.b16 %v48
  %v1094 = vunpack.c.l.b16 %v49
  %v1095 = vunpack.c.l.b16 %v50
  %v1096 = vunpack.c.l.b16 %v51
  %v1097 = vunpack.c.l.b16 %v52
  %v1098 = vunpack.c.l.b16 %v53
  %v1099 = vunpack.c.l.b16 %v54
  %v1100 = vunpack.c.l.b16 %v55
  %v1101 = vunpack.c.l.b16 %v56
  %v1102 = vunpack.c.l.b16 %v57
  %v1103 = vunpack.c.l.b16 %v58
  %v1104 = vunpack.c.l.b16 %v59
  %v1105 = vunpack.c.l.b16 %v60
  %v1106 = vunpack.c.l.b16 %v61
  %v1107 = vunpack.c.l.b16 %v62
  %v1108 = vunpack.c.l.b16 %v63
  %v1109 = vunpack.c.l.b16 %v64
  %v1110 = vunpack.c.l.b16 %v65
  %v1111 = vunpack.c.l.b16 %v66
  %v1112 = vunpack.c.l.b16 %v67
  %v1113 = vunpack.c.l.b16 %v68
  %v1114 = vunpack.c.l.b16 %v69
  %v1115 = vunpack.c.l.b16 %v70
  %v1116 = vunpack.c.l.b16 %v71
  %v1117 = vunpack.c.l.b16 %v72
  %v1118 = vunpack.c.l.b16 %v73
  %v1119 = vunpack.c.l.b16 %v74
  %v1120 = vunpack.c.l.b16 %v75
  %v1121 = vunpack.c.l.b16 %v76
  %v1122 = vunpack.c.l.b16 %v77
  %v1123 = vunpack.c.l.b16 %v78
  %v1124 = vunpack.c.l.b16 %v79
  %v1125 = vunpack.c.l.b16 %v80
  %v1126 = vunpack.c.l.b16 %v81
  %v1127 = vunpack.c.l.b16 %v82
  %v1128 = vunpack.c.l.b16 %v83
  %v1129 = vunpack.c.l.b16 %v84
  %v1130 = vunpack.c.l.b16 %v85
  %v1131 = vunpack.c.l.b16 %v86
  %v1132 = vunpack.c.l.b16 %v87
  %v1133 = vunpack.c.l.b16 %v88
  %v1134 = vunpack.c.l.b16 %v89
  %v1135 = vunpack.c.l.b16 %v90
  %v1136 = vunpack.c.l.b16 %v91
  %v1137 = vunpack.c.l.b16 %v92
  %v1138 = vunpack.c.l.b16 %v93
  %v1139 = vunpack.c.l.b16 %v94
  %v1140 = vunpack.c.l.b16 %v95
  %v1141 = vunpack.c.l.b16 %v96
  %v1142 = vunpack.c.l.b16 %v97
  %v1143 = vunpack.c.l.b16 %v98
  %v1144 = vunpack.c.l.b16 %v99
  %v1145 = vunpack.c.l.b16 %v100
  %v1146 = vunpack.c.l.b16 %v101
  %v1147 = vunpack.c.l.b16 %v102
  %v1148 = vunpack.c.l.b16 %v103
  %v1149 = vunpack.c.l.b16 %v104
  %v1150 = vunpack.c.l.b16 %v105
  %v1151 = vunpack.c.l.b16 %v106
  %v1152 = vunpack.c.l.b16 %v107
  %v1153 = vunpack.c.l.b16 %v108
  %v1154 = vunpack.c.l.b16 %v109
  %v1155 = vunpack.c.l.b16 %v110
  %v1156 = vunpack.c.l.b16 %v111
  %v1157 = vunpack.c.l.b16 %v112
  %v1158 = vunpack.c.l.b16 %v113
  %v1159 = vunpack.c.l.b16 %v114
  %v1160 = vunpack.c.l.b16 %v115
  %v1161 = vunpack.c.l.b16 %v116
  %v1162 = vunpack.c.l.b16 %v117
  %v1163 = vunpack.c.l.b16 %v118
  %v1164 = vunpack.c.l.b16 %v119
  %v1165 = vunpack.c.l.b16 %v120
  %v1166 = vunpack.c.l.b16 %v121
  %v1167 = vunpack.c.l.b16 %v122
  %v1168 = vunpack.c.l.b16 %v123
  %v1169 = vunpack.c.l.b16 %v124
  %v1170 = vunpack.c.l.b16 %v125
  %v1171 = vunpack.c.l.b16 %v126
  %v1172 = vunpack.c.l.b16 %v127
  %v1173 = vunpack.c.l.b16 %v128
  %v1174 = vunpack.c.l.b16 %v129
  %v1175 = vunpack.c.l.b16 %v130
  %v1176 = vunpack.c.l.b16 %v131
  %v1177 = vunpack.c.l.b16 %v132
  %v1178 = vunpack.c.l.b16 %v133
  %v1179 = vunpack.c.l.b16 %v134
  %v1180 = vunpack.c.l.b16 %v135
  %v1181 = vunpack.c.l.b16 %v136
  %v1182 = vunpack.c.l.b16 %v137
  %v1183 = vunpack.c.l.b16 %v138
  %v1184 = vunpack.c.l.b16 %v139
  %v1185 = vunpack.c.l.b16 %v140
  %v1186 = vunpack.c.l.b16 %v141
  %v1187 = vunpack.c.l.b16 %v142
  %v1188 = vunpack.c.l.b16 %v143
  %v1189 = vunpack.c.l.b16 %v144
  %v1190 = vunpack.c.l.b16 %v145
  %v1191 = vunpack.c.l.b16 %v146
  %v1192 = vunpack.c.l.b16 %v147
  %v1193 = vunpack.c.l.b16 %v148
  %v1194 = vunpack.c.l.b16 %v149
  %v1195 = vunpack.c.l.b16 %v150
  %v1196 = vunpack.c.l.b16 %v151
  %v1197 = vunpack.c.l.b16 %v152
  %v1198 = vunpack.c.l.b16 %v153
  %v1199 = vunpack.c.l.b16 %v154
  %v1200 = vunpack.c.l.b16 %v155
  %v1201 = vunpack.c.l.b16 %v156
  %v1202 = vunpack.c.l.b16 %v157
  %v1203 = vunpack.c.l.b16 %v158
  %v1204 = vunpack.c.l.b16 %v159
  %v1205 = vunpack.c.l.b16 %v160
  %v1206 = vunpack.c.l.b16 %v161
  %v1207 = vunpack.c.l.b16 %v162
  %v1208 = vunpack.c.l.b16 %v163
  %v1209 = vunpack.c.l.b16 %v164
  %v1210 = vunpack.c.l.b16 %v165
  %v1211 = vunpack.c.l.b16 %v166
  %v1212 = vunpack.c.l.b16 %v167
  %v1213 = vunpack.c.l.b16 %v168
  %v1214 = vunpack.c.l.b16 %v169
  %v1215 = vunpack.c.l.b16 %v170
  %v1216 = vunpack.c.l.b16 %v171
  %v1217 = vunpack.c.l.b16 %v172
  %v1218 = vunpack.c.l.b16 %v173
  %v1219 = vunpack.c.l.b16 %v174
  %v1220 = vunpack.c.l.b16 %v175
  %v1221 = vunpack.c.l.b16 %v176
  %v1222 = vunpack.c.l.b16 %v177
  %v1223 = vunpack.c.l.b16 %v178
  %v1224 = vunpack.c.l.b16 %v179
  %v1225 = vunpack.c.l.b16 %v180
  %v1226 = vunpack.c.l.b16 %v181
  %v1227 = vunpack.c.l.b16 %v182
  %v1228 = vunpack.c.l.b16 %v183
  %v1229 = vunpack.c.l.b16 %v184
  %v1230 = vunpack.c.l.b16 %v185
  %v1231 = vunpack.c.l.b16 %v186
  %v1232 = vunpack.c.l.b16 %v187
  %v1233 = vunpack.c.l.b16 %v188
  %v1234 = vunpack.c.l.b16 %v189
  %v1235 = vunpack.c.l.b16 %v190
  %v1236 = vunpack.c.l.b16 %v191
  %v1237 = vunpack.c.l.b16 %v192
  %v1238 = vunpack.c.l.b16 %v193
  %v1239 = vunpack.c.l.b16 %v194
  %v1240 = vunpack.c.l.b16 %v195
  %v1241 = vunpack.c.l.b16 %v196
  %v1242 = vunpack.c.l.b16 %v197
  %v1243 = vunpack.c.l.b16 %v198
  %v1244 = vunpack.c.l.b16 %v199
  %v1245 = vunpack.c.l.b16 %v200
  %v1246 = vunpack.c.l.b16 %v201
  %v1247 = vunpack.c.l.b16 %v202
  %v1248 = vunpack.c.l.b16 %v203
  %v1249 = vunpack.c.l.b16 %v204
  %v1250 = vunpack.c.l.b16 %v205
  %v1251 = vunpack.c.l.b16 %v206
  %v1252 = vunpack.c.l.b16 %v207
  %v1253 = vunpack.c.l.b16 %v208
  %v1254 = vunpack.c.l.b16 %v209
  %v1255 = vunpack.c.l.b16 %v210
  %v1256 = vunpack.c.l.b16 %v211
  %v1257 = vunpack.c.l.b16 %v212
  %v1258 = vunpack.c.l.b16 %v213
  %v1259 = vunpack.c.l.b16 %v214
  %v1260 = vunpack.c.l.b16 %v215
  %v1261 = vpack.c.b16 %v1070, %v1069
  %v1262 = vpack.c.b16 %v1072, %v1071
  %v1263 = vpack.c.b16 %v1074, %v1073
  %v1264 = vpack.c.b16 %v1076, %v1075
  %v1265 = vpack.c.b16 %v1078, %v1077
  %v1266 = vpack.c.b16 %v1080, %v1079
  %v1267 = vpack.c.b16 %v1082, %v1081
  %v1268 = vpack.c.b16 %v1084, %v1083
  %v1269 = vpack.c.b16 %v1086, %v1085
  %v1270 = vpack.c.b16 %v1088, %v1087
  %v1271 = vpack.c.b16 %v1090, %v1089
  %v1272 = vpack.c.b16 %v1092, %v1091
  %v1273 = vpack.c.b16 %v1094, %v1093
  %v1274 = vpack.c.b16 %v1096, %v1095
  %v1275 = vpack.c.b16 %v1098, %v1097
  %v1276 = vpack.c.b16 %v1100, %v1099
  %v1277 = vpack.c.b16 %v1102, %v1101
  %v1278 = vpack.c.b16 %v1104, %v1103
  %v1279 = vpack.c.b16 %v1106, %v1105
  %v1280 = vpack.c.b16 %v1108, %v1107
  %v1281 = vpack.c.b16 %v1110, %v1109
  %v1282 = vpack.c.b16 %v1112, %v1111
  %v1283 = vpack.c.b16 %v1114, %v1113
  %v1284 = vpack.c.b16 %v1116, %v1115
  %v1285 = vpack.c.b16 %v1118, %v1117
  %v1286 = vpack.c.b16 %v1120, %v1119
  %v1287 = vpack.c.b16 %v1122, %v1121
  %v1288 = vpack.c.b16 %v1124, %v1123
  %v1289 = vpack.c.b16 %v1126, %v1125
  %v1290 = vpack.c.b16 %v1128, %v1127
  %v1291 = vpack.c.b16 %v1130, %v1129
  %v1292 = vpack.c.b16 %v1132, %v1131
  %v1293 = vpack.c.b16 %v1134, %v1133
  %v1294 = vpack.c.b16 %v1136, %v1135
  %v1295 = vpack.c.b16 %v1138, %v1137
  %v1296 = vpack.c.b16 %v1140, %v1139
  %v1297 = vpack.c.b16 %v1142, %v1141
  %v1298 = vpack.c.b16 %v1144, %v1143
  %v1299 = vpack.c.b16 %v1146, %v1145
  %v1300 = vpack.c.b16 %v1148, %v1147
  %v1301 = vpack.c.b16 %v1150, %v1149
  %v1302 = vpack.c.b16 %v1152, %v1151
  %v1303 = vpack.c.b16 %v1154, %v1153
  %v1304 = vpack.c.b16 %v1156, %v1155
  %v1305 = vpack.c.b16 %v1158, %v1157
  %v1306 = vpack.c.b16 %v1160, %v1159
  %v1307 = vpack.c.b16 %v1162, %v1161
  %v1308 = vpack.c.b16 %v1164, %v1163
  %v1309 = vpack.c.b16 %v1166, %v1165
  %v1310 = vpack.c.b16 %v1168, %v1167
  %v1311 = vpack.c.b16 %v1170, %v1169
  %v1312 = vpack.c.b16 %v1172, %v1171
  %v1313 = vpack.c.b16 %v1174, %v1173
  %v1314 = vpack.c.b16 %v1176, %v1175
  %v1315 = vpack.c.b16 %v1178, %v1177
  %v1316 = vpack.c.b16 %v1180, %v1179
  %v1317 = vpack.c.b16 %v1182, %v1181
  %v1318 = vpack.c.b16 %v1184, %v1183
  %v1319 = vpack.c.b16 %v1186, %v1185
  %v1320 = vpack.c.b16 %v1188, %v1187
  %v1321 = vpack.c.b16 %v1190, %v1189
  %v1322 = vpack.c.b16 %v1192, %v1191
  %v1323 = vpack.c.b16 %v1194, %v1193
  %v1324 = vpack.c.b16 %v1196, %v1195
  %v1325 = vpack.c.b16 %v1198, %v1197
  %v1326 = vpack.c.b16 %v1200, %v1199
  %v1327 = vpack.c.b16 %v1202, %v1201
  %v1328 = vpack.c.b16 %v1204, %v1203
  %v1329 = vpack.c.b16 %v1206, %v1205
  %v1330 = vpack.c.b16 %v1208, %v1207
  %v1331 = vpack.c.b16 %v1210, %v1209
  %v1332 = vpack.c.b16 %v1212, %v1211
  %v1333 = vpack.c.b16 %v1214, %v1213
  %v1334 = vpack.c.b16 %v1216, %v1215
  %v1335 = vpack.c.b16 %v1218, %v1217
  %v1336 = vpack.c.b16 %v1220, %v1219
  %v1337 = vpack.c.b16 %v1222, %v1221
  %v1338 = vpack.c.b16 %v1224, %v1223
  %v1339 = vpack.c.b16 %v1226, %v1225
  %v1340 = vpack.c.b16 %v1228, %v1227
  %v1341 = vpack.c.b16 %v1230, %v1229
  %v1342 = vpack.c.b16 %v1232, %v1231
  %v1343 = vpack.c.b16 %v1234, %v1233
  %v1344 = vpack.c.b16 %v1236, %v1235
  %v1345 = vpack.c.b16 %v1238, %v1237
  %v1346 = vpack.c.b16 %v1240, %v1239
  %v1347 = vpack.c.b16 %v1242, %v1241
  %v1348 = vpack.c.b16 %v1244, %v1243
  %v1349 = vpack.c.b16 %v1246, %v1245
  %v1350 = vpack.c.b16 %v1248, %v1247
  %v1351 = vpack.c.b16 %v1250, %v1249
  %v1352 = vpack.c.b16 %v1252, %v1251
  %v1353 = vpack.c.b16 %v1254, %v1253
  %v1354 = vpack.c.b16 %v1256, %v1255
  %v1355 = vpack.c.b16 %v1258, %v1257
  %v1356 = vpack.c.b16 %v1260, %v1259
  %1453 = vmatpush.bf16.msra.mxu0 %v1268
  %1454 = vmatpush.bf16.msra.mxu0 %v1267
  %1455 = vmatpush.bf16.msra.mxu0 %v1266
  %1456 = vmatpush.bf16.msra.mxu0 %v1265
  %1457 = vmatpush.bf16.msra.mxu0 %v1264
  %1458 = vmatpush.bf16.msra.mxu0 %v1263
  %1459 = vmatpush.bf16.msra.mxu0 %v1262
  %1460 = vmatpush.bf16.msra.mxu0 %v1261
  %1461 = vmatmul.bf16.gmra.mxu0 %v865
  %v1462 = vpop.f32.mrf.mxu0
  %v1463 = vadd.f32 %v216, %v1462
  %v1464 = vpop.f32.mrf.mxu0
  %1465 = vdwg.mxu0
  %1466 = vmatpush.bf16.msra.mxu0 %v1276
  %1467 = vmatpush.bf16.msra.mxu0 %v1275
  %1468 = vmatpush.bf16.msra.mxu0 %v1274
  %1469 = vmatpush.bf16.msra.mxu0 %v1273
  %1470 = vmatpush.bf16.msra.mxu0 %v1272
  %1471 = vmatpush.bf16.msra.mxu0 %v1271
  %1472 = vmatpush.bf16.msra.mxu0 %v1270
  %1473 = vmatpush.bf16.msra.mxu0 %v1269
  %1474 = vmatmul.bf16.gmra.mxu0 %v866
  %v1475 = vpop.f32.mrf.mxu0
  %v1476 = vadd.f32 %v1463, %v1475
  %v1477 = vpop.f32.mrf.mxu0
  %1478 = vdwg.mxu0
  %1479 = vmatpush.bf16.msra.mxu0 %v1284
  %1480 = vmatpush.bf16.msra.mxu0 %v1283
  %1481 = vmatpush.bf16.msra.mxu0 %v1282
  %1482 = vmatpush.bf16.msra.mxu0 %v1281
  %1483 = vmatpush.bf16.msra.mxu0 %v1280
  %1484 = vmatpush.bf16.msra.mxu0 %v1279
  %1485 = vmatpush.bf16.msra.mxu0 %v1278
  %1486 = vmatpush.bf16.msra.mxu0 %v1277
  %1487 = vmatmul.bf16.gmra.mxu0 %v867
  %v1488 = vpop.f32.mrf.mxu0
  %v1489 = vadd.f32 %v1476, %v1488
  %v1490 = vpop.f32.mrf.mxu0
  %1491 = vdwg.mxu0
  %1492 = vmatpush.bf16.msra.mxu0 %v1292
  %1493 = vmatpush.bf16.msra.mxu0 %v1291
  %1494 = vmatpush.bf16.msra.mxu0 %v1290
  %1495 = vmatpush.bf16.msra.mxu0 %v1289
  %1496 = vmatpush.bf16.msra.mxu0 %v1288
  %1497 = vmatpush.bf16.msra.mxu0 %v1287
  %1498 = vmatpush.bf16.msra.mxu0 %v1286
  %1499 = vmatpush.bf16.msra.mxu0 %v1285
  %1500 = vmatmul.bf16.gmra.mxu0 %v868
  %v1501 = vpop.f32.mrf.mxu0
  %v1502 = vadd.f32 %v1489, %v1501
  %v1503 = vpop.f32.mrf.mxu0
  %1504 = vdwg.mxu0
  %1505 = vmatpush.bf16.msra.mxu0 %v1300
  %1506 = vmatpush.bf16.msra.mxu0 %v1299
  %1507 = vmatpush.bf16.msra.mxu0 %v1298
  %1508 = vmatpush.bf16.msra.mxu0 %v1297
  %1509 = vmatpush.bf16.msra.mxu0 %v1296
  %1510 = vmatpush.bf16.msra.mxu0 %v1295
  %1511 = vmatpush.bf16.msra.mxu0 %v1294
  %1512 = vmatpush.bf16.msra.mxu0 %v1293
  %1513 = vmatmul.bf16.gmra.mxu0 %v869
  %v1514 = vpop.f32.mrf.mxu0
  %v1515 = vadd.f32 %v1502, %v1514
  %v1516 = vpop.f32.mrf.mxu0
  %1517 = vdwg.mxu0
  %1518 = vmatpush.bf16.msra.mxu0 %v1308
  %1519 = vmatpush.bf16.msra.mxu0 %v1307
  %1520 = vmatpush.bf16.msra.mxu0 %v1306
  %1521 = vmatpush.bf16.msra.mxu0 %v1305
  %1522 = vmatpush.bf16.msra.mxu0 %v1304
  %1523 = vmatpush.bf16.msra.mxu0 %v1303
  %1524 = vmatpush.bf16.msra.mxu0 %v1302
  %1525 = vmatpush.bf16.msra.mxu0 %v1301
  %1526 = vmatmul.bf16.gmra.mxu0 %v870
  %v1527 = vpop.f32.mrf.mxu0
  %v1528 = vadd.f32 %v1515, %v1527
  %v1529 = vpop.f32.mrf.mxu0
  %1530 = vdwg.mxu0
  %1531 = vmatpush.bf16.msra.mxu0 %v1316
  %1532 = vmatpush.bf16.msra.mxu0 %v1315
  %1533 = vmatpush.bf16.msra.mxu0 %v1314
  %1534 = vmatpush.bf16.msra.mxu0 %v1313
  %1535 = vmatpush.bf16.msra.mxu0 %v1312
  %1536 = vmatpush.bf16.msra.mxu0 %v1311
  %1537 = vmatpush.bf16.msra.mxu0 %v1310
  %1538 = vmatpush.bf16.msra.mxu0 %v1309
  %1539 = vmatmul.bf16.gmra.mxu0 %v871
  %v1540 = vpop.f32.mrf.mxu0
  %v1541 = vadd.f32 %v1528, %v1540
  %v1542 = vpop.f32.mrf.mxu0
  %1543 = vdwg.mxu0
  %1544 = vmatpush.bf16.msra.mxu0 %v1324
  %1545 = vmatpush.bf16.msra.mxu0 %v1323
  %1546 = vmatpush.bf16.msra.mxu0 %v1322
  %1547 = vmatpush.bf16.msra.mxu0 %v1321
  %1548 = vmatpush.bf16.msra.mxu0 %v1320
  %1549 = vmatpush.bf16.msra.mxu0 %v1319
  %1550 = vmatpush.bf16.msra.mxu0 %v1318
  %1551 = vmatpush.bf16.msra.mxu0 %v1317
  %1552 = vmatmul.bf16.gmra.mxu0 %v872
  %v1553 = vpop.f32.mrf.mxu0
  %v1554 = vadd.f32 %v1541, %v1553
  %v1555 = vpop.f32.mrf.mxu0
  %1556 = vdwg.mxu0
  %1557 = vmatpush.bf16.msra.mxu0 %v1332
  %1558 = vmatpush.bf16.msra.mxu0 %v1331
  %1559 = vmatpush.bf16.msra.mxu0 %v1330
  %1560 = vmatpush.bf16.msra.mxu0 %v1329
  %1561 = vmatpush.bf16.msra.mxu0 %v1328
  %1562 = vmatpush.bf16.msra.mxu0 %v1327
  %1563 = vmatpush.bf16.msra.mxu0 %v1326
  %1564 = vmatpush.bf16.msra.mxu0 %v1325
  %1565 = vmatmul.bf16.gmra.mxu0 %v873
  %v1566 = vpop.f32.mrf.mxu0
  %v1567 = vadd.f32 %v1554, %v1566
  %v1568 = vpop.f32.mrf.mxu0
  %1569 = vdwg.mxu0
  %1570 = vmatpush.bf16.msra.mxu0 %v1340
  %1571 = vmatpush.bf16.msra.mxu0 %v1339
  %1572 = vmatpush.bf16.msra.mxu0 %v1338
  %1573 = vmatpush.bf16.msra.mxu0 %v1337
  %1574 = vmatpush.bf16.msra.mxu0 %v1336
  %1575 = vmatpush.bf16.msra.mxu0 %v1335
  %1576 = vmatpush.bf16.msra.mxu0 %v1334
  %1577 = vmatpush.bf16.msra.mxu0 %v1333
  %1578 = vmatmul.bf16.gmra.mxu0 %v874
  %v1579 = vpop.f32.mrf.mxu0
  %v1580 = vadd.f32 %v1567, %v1579
  %v1581 = vpop.f32.mrf.mxu0
  %1582 = vdwg.mxu0
  %1583 = vmatpush.bf16.msra.mxu0 %v1348
  %1584 = vmatpush.bf16.msra.mxu0 %v1347
  %1585 = vmatpush.bf16.msra.mxu0 %v1346
  %1586 = vmatpush.bf16.msra.mxu0 %v1345
  %1587 = vmatpush.bf16.msra.mxu0 %v1344
  %1588 = vmatpush.bf16.msra.mxu0 %v1343
  %1589 = vmatpush.bf16.msra.mxu0 %v1342
  %1590 = vmatpush.bf16.msra.mxu0 %v1341
  %1591 = vmatmul.bf16.gmra.mxu0 %v875
  %v1592 = vpop.f32.mrf.mxu0
  %v1593 = vadd.f32 %v1580, %v1592
  %v1594 = vpop.f32.mrf.mxu0
  %1595 = vdwg.mxu0
  %1596 = vmatpush.bf16.msra.mxu0 %v1356
  %1597 = vmatpush.bf16.msra.mxu0 %v1355
  %1598 = vmatpush.bf16.msra.mxu0 %v1354
  %1599 = vmatpush.bf16.msra.mxu0 %v1353
  %1600 = vmatpush.bf16.msra.mxu0 %v1352
  %1601 = vmatpush.bf16.msra.mxu0 %v1351
  %1602 = vmatpush.bf16.msra.mxu0 %v1350
  %1603 = vmatpush.bf16.msra.mxu0 %v1349
  %1604 = vmatmul.bf16.gmra.mxu0 %v876
  %v1605 = vpop.f32.mrf.mxu0
  %v1606 = vadd.f32 %v1593, %v1605
  %v1607 = vpop.f32.mrf.mxu0
  %1608 = vdwg.mxu0
  %v1609 = vadd.f32 %v1606, 1e-06
  %v1610 = vmul.f32 %v1609, 0.5
  %v1611 = vmul.f32 %v1610, 1.442695
  %v1612 = vpow.pop %v1611
  %v1613 = vmul.f32 %v1606, %v1606
  %v1614 = vmul.f32 %v1612, %v1612
  %1616 = vrot.lane.b32.xlu0 %v1614, 120
  %v1617 = vpop.permute.xlu0 %1616
  %v1619 = vadd.f32 %v1613, %v1617
  %1621 = vrot.lane.b32.xlu0 %v1609, 120
  %v1622 = vpop.permute.xlu0 %1621
  %v1624 = vsub.f32 %v1619, %v1622
  %v1625 = vsub.f32 %v1624, 1.0
  %vm1626 = vcmask 58368
  %v1627 = vsel %vm1626, %v1625, 0.0
  %1628 = vadd.xlane.f32.xlu0 %v1627
  %v1629 = vpop.xlane.xlu0 %1628
  %v1630 = vrot.slane %v1629, 4
  %v1631 = vadd.f32 %v1629, %v1630
  %v1632 = vrot.slane %v1631, 2
  %v1633 = vadd.f32 %v1631, %v1632
  %v1634 = vrot.slane %v1633, 1
  %v1635 = vadd.f32 %v1633, %v1634
  %s1636 = vtos %v1635
  %s1637 = smul.f32 %s1636, 0.5
  %s1638 = smul.f32 %s1637, 0.5
  %v1639 = vld [vmem:[%s1] sm:$0x3]
  %1641 = vrot.lane.b32.xlu0 %v1612, 120
  %v1642 = vpop.permute.xlu0 %1641
  %v1644 = vmul.f32 %v1639, %v1642
  %v1645 = vadd.f32 %v1606, %v1644
  %v1646 = vld [vmem:[%s3 + $0x180] sm:$0xff]
  %v1647 = vld [vmem:[%s3 + $0x188] sm:$0xff]
  %v1648 = vld [vmem:[%s3 + $0x190] sm:$0xff]
  %v1649 = vld [vmem:[%s3 + $0x198] sm:$0xff]
  %v1650 = vld [vmem:[%s3 + $0x1a0] sm:$0xff]
  %v1651 = vld [vmem:[%s3 + $0x1a8] sm:$0xff]
  %v1652 = vunpack.c.l.bf16 %v1646
  %v1653 = vunpack.c.h.bf16 %v1646
  %v1654 = vunpack.c.l.bf16 %v1647
  %v1655 = vunpack.c.h.bf16 %v1647
  %v1656 = vunpack.c.l.bf16 %v1648
  %v1657 = vunpack.c.h.bf16 %v1648
  %v1658 = vunpack.c.l.bf16 %v1649
  %v1659 = vunpack.c.h.bf16 %v1649
  %v1660 = vunpack.c.l.bf16 %v1650
  %v1661 = vunpack.c.h.bf16 %v1650
  %v1662 = vunpack.c.l.bf16 %v1651
  %v1663 = vunpack.c.h.bf16 %v1651
  %s1664 = scalar_lea.vmem %s5, 1
  %v1665 = vld [vmem:[%s1664] ss:$8 sm:$0xf]
  %v1666 = vld [vmem:[%s1664] ss:$8 sm:$0xf0]
  %v1667 = vor.u32 %v1665, %v1666
  %s1668 = scalar_lea.vmem %s5, 65
  %v1669 = vld [vmem:[%s1668] ss:$8 sm:$0xf]
  %1671 = vset.pattern.permute.xlu0 0
  %1672 = vperm.xlu0 %1671, %v1645
  %v1673 = vpop.permute.xlu0 %1672
  %v1675 = vperm.slane %v1652, 0
  %v1676 = vperm.slane %v1653, 0
  %v1677 = vperm.slane %v1654, 0
  %v1678 = vperm.slane %v1655, 0
  %v1679 = vperm.slane %v1656, 0
  %v1680 = vperm.slane %v1657, 0
  %v1681 = vperm.slane %v1658, 0
  %v1682 = vperm.slane %v1659, 0
  %v1683 = vperm.slane %v1660, 0
  %v1684 = vperm.slane %v1661, 0
  %v1685 = vperm.slane %v1662, 0
  %v1686 = vperm.slane %v1663, 0
  %v1687 = vmul.f32 %v1673, %v1675
  %v1688 = vmul.f32 %v1673, %v1676
  %v1689 = vmul.f32 %v1673, %v1677
  %v1690 = vmul.f32 %v1673, %v1678
  %v1691 = vmul.f32 %v1673, %v1679
  %v1692 = vmul.f32 %v1673, %v1680
  %v1693 = vmul.f32 %v1673, %v1681
  %v1694 = vmul.f32 %v1673, %v1682
  %v1695 = vmul.f32 %v1673, %v1683
  %v1696 = vmul.f32 %v1673, %v1684
  %v1697 = vmul.f32 %v1673, %v1685
  %v1698 = vmul.f32 %v1673, %v1686
  %v1701 = vperm.slane %v1667, 0
  %v1702 = vperm.slane %v1667, 1
  %v1703 = vperm.slane %v1667, 2
  %v1704 = vperm.slane %v1667, 3
  %v1705 = vperm.slane %v1667, 4
  %v1706 = vperm.slane %v1667, 5
  %v1707 = vperm.slane %v1667, 6
  %v1708 = vperm.slane %v1667, 7
  %v1709 = vperm.slane %v1669, 0
  %v1710 = vperm.slane %v1669, 1
  %v1711 = vperm.slane %v1669, 2
  %v1712 = vperm.slane %v1669, 3
  %v1725 = vadd.f32 %v1701, %v1687
  %v1726 = vadd.f32 %v1702, %v1688
  %v1727 = vadd.f32 %v1703, %v1689
  %v1728 = vadd.f32 %v1704, %v1690
  %v1729 = vadd.f32 %v1705, %v1691
  %v1730 = vadd.f32 %v1706, %v1692
  %v1731 = vadd.f32 %v1707, %v1693
  %v1732 = vadd.f32 %v1708, %v1694
  %v1733 = vadd.f32 %v1709, %v1695
  %v1734 = vadd.f32 %v1710, %v1696
  %v1735 = vadd.f32 %v1711, %v1697
  %v1736 = vadd.f32 %v1712, %v1698
  %1737 = vset.pattern.permute.xlu0 1
  %1738 = vperm.xlu0 %1737, %v1645
  %v1739 = vpop.permute.xlu0 %1738
  %v1741 = vperm.slane %v1652, 1
  %v1742 = vperm.slane %v1653, 1
  %v1743 = vperm.slane %v1654, 1
  %v1744 = vperm.slane %v1655, 1
  %v1745 = vperm.slane %v1656, 1
  %v1746 = vperm.slane %v1657, 1
  %v1747 = vperm.slane %v1658, 1
  %v1748 = vperm.slane %v1659, 1
  %v1749 = vperm.slane %v1660, 1
  %v1750 = vperm.slane %v1661, 1
  %v1751 = vperm.slane %v1662, 1
  %v1752 = vperm.slane %v1663, 1
  %v1753 = vmul.f32 %v1739, %v1741
  %v1754 = vmul.f32 %v1739, %v1742
  %v1755 = vmul.f32 %v1739, %v1743
  %v1756 = vmul.f32 %v1739, %v1744
  %v1757 = vmul.f32 %v1739, %v1745
  %v1758 = vmul.f32 %v1739, %v1746
  %v1759 = vmul.f32 %v1739, %v1747
  %v1760 = vmul.f32 %v1739, %v1748
  %v1761 = vmul.f32 %v1739, %v1749
  %v1762 = vmul.f32 %v1739, %v1750
  %v1763 = vmul.f32 %v1739, %v1751
  %v1764 = vmul.f32 %v1739, %v1752
  %v1765 = vadd.f32 %v1725, %v1753
  %v1766 = vadd.f32 %v1726, %v1754
  %v1767 = vadd.f32 %v1727, %v1755
  %v1768 = vadd.f32 %v1728, %v1756
  %v1769 = vadd.f32 %v1729, %v1757
  %v1770 = vadd.f32 %v1730, %v1758
  %v1771 = vadd.f32 %v1731, %v1759
  %v1772 = vadd.f32 %v1732, %v1760
  %v1773 = vadd.f32 %v1733, %v1761
  %v1774 = vadd.f32 %v1734, %v1762
  %v1775 = vadd.f32 %v1735, %v1763
  %v1776 = vadd.f32 %v1736, %v1764
  %1777 = vset.pattern.permute.xlu0 2
  %1778 = vperm.xlu0 %1777, %v1645
  %v1779 = vpop.permute.xlu0 %1778
  %v1781 = vperm.slane %v1652, 2
  %v1782 = vperm.slane %v1653, 2
  %v1783 = vperm.slane %v1654, 2
  %v1784 = vperm.slane %v1655, 2
  %v1785 = vperm.slane %v1656, 2
  %v1786 = vperm.slane %v1657, 2
  %v1787 = vperm.slane %v1658, 2
  %v1788 = vperm.slane %v1659, 2
  %v1789 = vperm.slane %v1660, 2
  %v1790 = vperm.slane %v1661, 2
  %v1791 = vperm.slane %v1662, 2
  %v1792 = vperm.slane %v1663, 2
  %v1793 = vmul.f32 %v1779, %v1781
  %v1794 = vmul.f32 %v1779, %v1782
  %v1795 = vmul.f32 %v1779, %v1783
  %v1796 = vmul.f32 %v1779, %v1784
  %v1797 = vmul.f32 %v1779, %v1785
  %v1798 = vmul.f32 %v1779, %v1786
  %v1799 = vmul.f32 %v1779, %v1787
  %v1800 = vmul.f32 %v1779, %v1788
  %v1801 = vmul.f32 %v1779, %v1789
  %v1802 = vmul.f32 %v1779, %v1790
  %v1803 = vmul.f32 %v1779, %v1791
  %v1804 = vmul.f32 %v1779, %v1792
  %v1805 = vadd.f32 %v1765, %v1793
  %v1806 = vadd.f32 %v1766, %v1794
  %v1807 = vadd.f32 %v1767, %v1795
  %v1808 = vadd.f32 %v1768, %v1796
  %v1809 = vadd.f32 %v1769, %v1797
  %v1810 = vadd.f32 %v1770, %v1798
  %v1811 = vadd.f32 %v1771, %v1799
  %v1812 = vadd.f32 %v1772, %v1800
  %v1813 = vadd.f32 %v1773, %v1801
  %v1814 = vadd.f32 %v1774, %v1802
  %v1815 = vadd.f32 %v1775, %v1803
  %v1816 = vadd.f32 %v1776, %v1804
  %1817 = vset.pattern.permute.xlu0 3
  %1818 = vperm.xlu0 %1817, %v1645
  %v1819 = vpop.permute.xlu0 %1818
  %v1821 = vperm.slane %v1652, 3
  %v1822 = vperm.slane %v1653, 3
  %v1823 = vperm.slane %v1654, 3
  %v1824 = vperm.slane %v1655, 3
  %v1825 = vperm.slane %v1656, 3
  %v1826 = vperm.slane %v1657, 3
  %v1827 = vperm.slane %v1658, 3
  %v1828 = vperm.slane %v1659, 3
  %v1829 = vperm.slane %v1660, 3
  %v1830 = vperm.slane %v1661, 3
  %v1831 = vperm.slane %v1662, 3
  %v1832 = vperm.slane %v1663, 3
  %v1833 = vmul.f32 %v1819, %v1821
  %v1834 = vmul.f32 %v1819, %v1822
  %v1835 = vmul.f32 %v1819, %v1823
  %v1836 = vmul.f32 %v1819, %v1824
  %v1837 = vmul.f32 %v1819, %v1825
  %v1838 = vmul.f32 %v1819, %v1826
  %v1839 = vmul.f32 %v1819, %v1827
  %v1840 = vmul.f32 %v1819, %v1828
  %v1841 = vmul.f32 %v1819, %v1829
  %v1842 = vmul.f32 %v1819, %v1830
  %v1843 = vmul.f32 %v1819, %v1831
  %v1844 = vmul.f32 %v1819, %v1832
  %v1845 = vadd.f32 %v1805, %v1833
  %v1846 = vadd.f32 %v1806, %v1834
  %v1847 = vadd.f32 %v1807, %v1835
  %v1848 = vadd.f32 %v1808, %v1836
  %v1849 = vadd.f32 %v1809, %v1837
  %v1850 = vadd.f32 %v1810, %v1838
  %v1851 = vadd.f32 %v1811, %v1839
  %v1852 = vadd.f32 %v1812, %v1840
  %v1853 = vadd.f32 %v1813, %v1841
  %v1854 = vadd.f32 %v1814, %v1842
  %v1855 = vadd.f32 %v1815, %v1843
  %v1856 = vadd.f32 %v1816, %v1844
  %1857 = vset.pattern.permute.xlu0 4
  %1858 = vperm.xlu0 %1857, %v1645
  %v1859 = vpop.permute.xlu0 %1858
  %v1861 = vperm.slane %v1652, 4
  %v1862 = vperm.slane %v1653, 4
  %v1863 = vperm.slane %v1654, 4
  %v1864 = vperm.slane %v1655, 4
  %v1865 = vperm.slane %v1656, 4
  %v1866 = vperm.slane %v1657, 4
  %v1867 = vperm.slane %v1658, 4
  %v1868 = vperm.slane %v1659, 4
  %v1869 = vperm.slane %v1660, 4
  %v1870 = vperm.slane %v1661, 4
  %v1871 = vperm.slane %v1662, 4
  %v1872 = vperm.slane %v1663, 4
  %v1873 = vmul.f32 %v1859, %v1861
  %v1874 = vmul.f32 %v1859, %v1862
  %v1875 = vmul.f32 %v1859, %v1863
  %v1876 = vmul.f32 %v1859, %v1864
  %v1877 = vmul.f32 %v1859, %v1865
  %v1878 = vmul.f32 %v1859, %v1866
  %v1879 = vmul.f32 %v1859, %v1867
  %v1880 = vmul.f32 %v1859, %v1868
  %v1881 = vmul.f32 %v1859, %v1869
  %v1882 = vmul.f32 %v1859, %v1870
  %v1883 = vmul.f32 %v1859, %v1871
  %v1884 = vmul.f32 %v1859, %v1872
  %v1885 = vadd.f32 %v1845, %v1873
  %v1886 = vadd.f32 %v1846, %v1874
  %v1887 = vadd.f32 %v1847, %v1875
  %v1888 = vadd.f32 %v1848, %v1876
  %v1889 = vadd.f32 %v1849, %v1877
  %v1890 = vadd.f32 %v1850, %v1878
  %v1891 = vadd.f32 %v1851, %v1879
  %v1892 = vadd.f32 %v1852, %v1880
  %v1893 = vadd.f32 %v1853, %v1881
  %v1894 = vadd.f32 %v1854, %v1882
  %v1895 = vadd.f32 %v1855, %v1883
  %v1896 = vadd.f32 %v1856, %v1884
  %1897 = vset.pattern.permute.xlu0 5
  %1898 = vperm.xlu0 %1897, %v1645
  %v1899 = vpop.permute.xlu0 %1898
  %v1901 = vperm.slane %v1652, 5
  %v1902 = vperm.slane %v1653, 5
  %v1903 = vperm.slane %v1654, 5
  %v1904 = vperm.slane %v1655, 5
  %v1905 = vperm.slane %v1656, 5
  %v1906 = vperm.slane %v1657, 5
  %v1907 = vperm.slane %v1658, 5
  %v1908 = vperm.slane %v1659, 5
  %v1909 = vperm.slane %v1660, 5
  %v1910 = vperm.slane %v1661, 5
  %v1911 = vperm.slane %v1662, 5
  %v1912 = vperm.slane %v1663, 5
  %v1913 = vmul.f32 %v1899, %v1901
  %v1914 = vmul.f32 %v1899, %v1902
  %v1915 = vmul.f32 %v1899, %v1903
  %v1916 = vmul.f32 %v1899, %v1904
  %v1917 = vmul.f32 %v1899, %v1905
  %v1918 = vmul.f32 %v1899, %v1906
  %v1919 = vmul.f32 %v1899, %v1907
  %v1920 = vmul.f32 %v1899, %v1908
  %v1921 = vmul.f32 %v1899, %v1909
  %v1922 = vmul.f32 %v1899, %v1910
  %v1923 = vmul.f32 %v1899, %v1911
  %v1924 = vmul.f32 %v1899, %v1912
  %v1925 = vadd.f32 %v1885, %v1913
  %v1926 = vadd.f32 %v1886, %v1914
  %v1927 = vadd.f32 %v1887, %v1915
  %v1928 = vadd.f32 %v1888, %v1916
  %v1929 = vadd.f32 %v1889, %v1917
  %v1930 = vadd.f32 %v1890, %v1918
  %v1931 = vadd.f32 %v1891, %v1919
  %v1932 = vadd.f32 %v1892, %v1920
  %v1933 = vadd.f32 %v1893, %v1921
  %v1934 = vadd.f32 %v1894, %v1922
  %v1935 = vadd.f32 %v1895, %v1923
  %v1936 = vadd.f32 %v1896, %v1924
  %1937 = vset.pattern.permute.xlu0 6
  %1938 = vperm.xlu0 %1937, %v1645
  %v1939 = vpop.permute.xlu0 %1938
  %v1941 = vperm.slane %v1652, 6
  %v1942 = vperm.slane %v1653, 6
  %v1943 = vperm.slane %v1654, 6
  %v1944 = vperm.slane %v1655, 6
  %v1945 = vperm.slane %v1656, 6
  %v1946 = vperm.slane %v1657, 6
  %v1947 = vperm.slane %v1658, 6
  %v1948 = vperm.slane %v1659, 6
  %v1949 = vperm.slane %v1660, 6
  %v1950 = vperm.slane %v1661, 6
  %v1951 = vperm.slane %v1662, 6
  %v1952 = vperm.slane %v1663, 6
  %v1953 = vmul.f32 %v1939, %v1941
  %v1954 = vmul.f32 %v1939, %v1942
  %v1955 = vmul.f32 %v1939, %v1943
  %v1956 = vmul.f32 %v1939, %v1944
  %v1957 = vmul.f32 %v1939, %v1945
  %v1958 = vmul.f32 %v1939, %v1946
  %v1959 = vmul.f32 %v1939, %v1947
  %v1960 = vmul.f32 %v1939, %v1948
  %v1961 = vmul.f32 %v1939, %v1949
  %v1962 = vmul.f32 %v1939, %v1950
  %v1963 = vmul.f32 %v1939, %v1951
  %v1964 = vmul.f32 %v1939, %v1952
  %v1965 = vadd.f32 %v1925, %v1953
  %v1966 = vadd.f32 %v1926, %v1954
  %v1967 = vadd.f32 %v1927, %v1955
  %v1968 = vadd.f32 %v1928, %v1956
  %v1969 = vadd.f32 %v1929, %v1957
  %v1970 = vadd.f32 %v1930, %v1958
  %v1971 = vadd.f32 %v1931, %v1959
  %v1972 = vadd.f32 %v1932, %v1960
  %v1973 = vadd.f32 %v1933, %v1961
  %v1974 = vadd.f32 %v1934, %v1962
  %v1975 = vadd.f32 %v1935, %v1963
  %v1976 = vadd.f32 %v1936, %v1964
  %1977 = vset.pattern.permute.xlu0 7
  %1978 = vperm.xlu0 %1977, %v1645
  %v1979 = vpop.permute.xlu0 %1978
  %v1981 = vperm.slane %v1652, 7
  %v1982 = vperm.slane %v1653, 7
  %v1983 = vperm.slane %v1654, 7
  %v1984 = vperm.slane %v1655, 7
  %v1985 = vperm.slane %v1656, 7
  %v1986 = vperm.slane %v1657, 7
  %v1987 = vperm.slane %v1658, 7
  %v1988 = vperm.slane %v1659, 7
  %v1989 = vperm.slane %v1660, 7
  %v1990 = vperm.slane %v1661, 7
  %v1991 = vperm.slane %v1662, 7
  %v1992 = vperm.slane %v1663, 7
  %v1993 = vmul.f32 %v1979, %v1981
  %v1994 = vmul.f32 %v1979, %v1982
  %v1995 = vmul.f32 %v1979, %v1983
  %v1996 = vmul.f32 %v1979, %v1984
  %v1997 = vmul.f32 %v1979, %v1985
  %v1998 = vmul.f32 %v1979, %v1986
  %v1999 = vmul.f32 %v1979, %v1987
  %v2000 = vmul.f32 %v1979, %v1988
  %v2001 = vmul.f32 %v1979, %v1989
  %v2002 = vmul.f32 %v1979, %v1990
  %v2003 = vmul.f32 %v1979, %v1991
  %v2004 = vmul.f32 %v1979, %v1992
  %v2005 = vadd.f32 %v1965, %v1993
  %v2006 = vadd.f32 %v1966, %v1994
  %v2007 = vadd.f32 %v1967, %v1995
  %v2008 = vadd.f32 %v1968, %v1996
  %v2009 = vadd.f32 %v1969, %v1997
  %v2010 = vadd.f32 %v1970, %v1998
  %v2011 = vadd.f32 %v1971, %v1999
  %v2012 = vadd.f32 %v1972, %v2000
  %v2013 = vadd.f32 %v1973, %v2001
  %v2014 = vadd.f32 %v1974, %v2002
  %v2015 = vadd.f32 %v1975, %v2003
  %v2016 = vadd.f32 %v1976, %v2004
  %v2017 = vmax.f32 %v2005, 0.0
  %v2018 = vmax.f32 %v2006, 0.0
  %v2019 = vmax.f32 %v2007, 0.0
  %v2020 = vmax.f32 %v2008, 0.0
  %v2021 = vmax.f32 %v2009, 0.0
  %v2022 = vmax.f32 %v2010, 0.0
  %v2023 = vmax.f32 %v2011, 0.0
  %v2024 = vmax.f32 %v2012, 0.0
  %v2025 = vmax.f32 %v2013, 0.0
  %v2026 = vmax.f32 %v2014, 0.0
  %v2027 = vmax.f32 %v2015, 0.0
  %v2028 = vmax.f32 %v2016, 0.0
  %v2029 = vpack.c.bf16 %v2017, %v2017
  %v2030 = vpack.c.bf16 %v2018, %v2018
  %v2031 = vpack.c.bf16 %v2019, %v2019
  %v2032 = vpack.c.bf16 %v2020, %v2020
  %v2033 = vpack.c.bf16 %v2021, %v2021
  %v2034 = vpack.c.bf16 %v2022, %v2022
  %v2035 = vpack.c.bf16 %v2023, %v2023
  %v2036 = vpack.c.bf16 %v2024, %v2024
  %v2037 = vpack.c.bf16 %v2025, %v2025
  %v2038 = vpack.c.bf16 %v2026, %v2026
  %v2039 = vpack.c.bf16 %v2027, %v2027
  %v2040 = vpack.c.bf16 %v2028, %v2028
  %2041 = vmatpush.bf16.msra.mxu0 %v1268
  %2042 = vmatpush.bf16.msra.mxu0 %v1267
  %2043 = vmatpush.bf16.msra.mxu0 %v1266
  %2044 = vmatpush.bf16.msra.mxu0 %v1265
  %2045 = vmatpush.bf16.msra.mxu0 %v1264
  %2046 = vmatpush.bf16.msra.mxu0 %v1263
  %2047 = vmatpush.bf16.msra.mxu0 %v1262
  %2048 = vmatpush.bf16.msra.mxu0 %v1261
  %2049 = vmatmul.bf16.gmra.mxu0 %v2029
  %v2050 = vpop.f32.mrf.mxu0
  %v2051 = vadd.f32 %v216, %v2050
  %v2052 = vpop.f32.mrf.mxu0
  %2053 = vdwg.mxu0
  %2054 = vmatpush.bf16.msra.mxu0 %v1276
  %2055 = vmatpush.bf16.msra.mxu0 %v1275
  %2056 = vmatpush.bf16.msra.mxu0 %v1274
  %2057 = vmatpush.bf16.msra.mxu0 %v1273
  %2058 = vmatpush.bf16.msra.mxu0 %v1272
  %2059 = vmatpush.bf16.msra.mxu0 %v1271
  %2060 = vmatpush.bf16.msra.mxu0 %v1270
  %2061 = vmatpush.bf16.msra.mxu0 %v1269
  %2062 = vmatmul.bf16.gmra.mxu0 %v2030
  %v2063 = vpop.f32.mrf.mxu0
  %v2064 = vadd.f32 %v2051, %v2063
  %v2065 = vpop.f32.mrf.mxu0
  %2066 = vdwg.mxu0
  %2067 = vmatpush.bf16.msra.mxu0 %v1284
  %2068 = vmatpush.bf16.msra.mxu0 %v1283
  %2069 = vmatpush.bf16.msra.mxu0 %v1282
  %2070 = vmatpush.bf16.msra.mxu0 %v1281
  %2071 = vmatpush.bf16.msra.mxu0 %v1280
  %2072 = vmatpush.bf16.msra.mxu0 %v1279
  %2073 = vmatpush.bf16.msra.mxu0 %v1278
  %2074 = vmatpush.bf16.msra.mxu0 %v1277
  %2075 = vmatmul.bf16.gmra.mxu0 %v2031
  %v2076 = vpop.f32.mrf.mxu0
  %v2077 = vadd.f32 %v2064, %v2076
  %v2078 = vpop.f32.mrf.mxu0
  %2079 = vdwg.mxu0
  %2080 = vmatpush.bf16.msra.mxu0 %v1292
  %2081 = vmatpush.bf16.msra.mxu0 %v1291
  %2082 = vmatpush.bf16.msra.mxu0 %v1290
  %2083 = vmatpush.bf16.msra.mxu0 %v1289
  %2084 = vmatpush.bf16.msra.mxu0 %v1288
  %2085 = vmatpush.bf16.msra.mxu0 %v1287
  %2086 = vmatpush.bf16.msra.mxu0 %v1286
  %2087 = vmatpush.bf16.msra.mxu0 %v1285
  %2088 = vmatmul.bf16.gmra.mxu0 %v2032
  %v2089 = vpop.f32.mrf.mxu0
  %v2090 = vadd.f32 %v2077, %v2089
  %v2091 = vpop.f32.mrf.mxu0
  %2092 = vdwg.mxu0
  %2093 = vmatpush.bf16.msra.mxu0 %v1300
  %2094 = vmatpush.bf16.msra.mxu0 %v1299
  %2095 = vmatpush.bf16.msra.mxu0 %v1298
  %2096 = vmatpush.bf16.msra.mxu0 %v1297
  %2097 = vmatpush.bf16.msra.mxu0 %v1296
  %2098 = vmatpush.bf16.msra.mxu0 %v1295
  %2099 = vmatpush.bf16.msra.mxu0 %v1294
  %2100 = vmatpush.bf16.msra.mxu0 %v1293
  %2101 = vmatmul.bf16.gmra.mxu0 %v2033
  %v2102 = vpop.f32.mrf.mxu0
  %v2103 = vadd.f32 %v2090, %v2102
  %v2104 = vpop.f32.mrf.mxu0
  %2105 = vdwg.mxu0
  %2106 = vmatpush.bf16.msra.mxu0 %v1308
  %2107 = vmatpush.bf16.msra.mxu0 %v1307
  %2108 = vmatpush.bf16.msra.mxu0 %v1306
  %2109 = vmatpush.bf16.msra.mxu0 %v1305
  %2110 = vmatpush.bf16.msra.mxu0 %v1304
  %2111 = vmatpush.bf16.msra.mxu0 %v1303
  %2112 = vmatpush.bf16.msra.mxu0 %v1302
  %2113 = vmatpush.bf16.msra.mxu0 %v1301
  %2114 = vmatmul.bf16.gmra.mxu0 %v2034
  %v2115 = vpop.f32.mrf.mxu0
  %v2116 = vadd.f32 %v2103, %v2115
  %v2117 = vpop.f32.mrf.mxu0
  %2118 = vdwg.mxu0
  %2119 = vmatpush.bf16.msra.mxu0 %v1316
  %2120 = vmatpush.bf16.msra.mxu0 %v1315
  %2121 = vmatpush.bf16.msra.mxu0 %v1314
  %2122 = vmatpush.bf16.msra.mxu0 %v1313
  %2123 = vmatpush.bf16.msra.mxu0 %v1312
  %2124 = vmatpush.bf16.msra.mxu0 %v1311
  %2125 = vmatpush.bf16.msra.mxu0 %v1310
  %2126 = vmatpush.bf16.msra.mxu0 %v1309
  %2127 = vmatmul.bf16.gmra.mxu0 %v2035
  %v2128 = vpop.f32.mrf.mxu0
  %v2129 = vadd.f32 %v2116, %v2128
  %v2130 = vpop.f32.mrf.mxu0
  %2131 = vdwg.mxu0
  %2132 = vmatpush.bf16.msra.mxu0 %v1324
  %2133 = vmatpush.bf16.msra.mxu0 %v1323
  %2134 = vmatpush.bf16.msra.mxu0 %v1322
  %2135 = vmatpush.bf16.msra.mxu0 %v1321
  %2136 = vmatpush.bf16.msra.mxu0 %v1320
  %2137 = vmatpush.bf16.msra.mxu0 %v1319
  %2138 = vmatpush.bf16.msra.mxu0 %v1318
  %2139 = vmatpush.bf16.msra.mxu0 %v1317
  %2140 = vmatmul.bf16.gmra.mxu0 %v2036
  %v2141 = vpop.f32.mrf.mxu0
  %v2142 = vadd.f32 %v2129, %v2141
  %v2143 = vpop.f32.mrf.mxu0
  %2144 = vdwg.mxu0
  %2145 = vmatpush.bf16.msra.mxu0 %v1332
  %2146 = vmatpush.bf16.msra.mxu0 %v1331
  %2147 = vmatpush.bf16.msra.mxu0 %v1330
  %2148 = vmatpush.bf16.msra.mxu0 %v1329
  %2149 = vmatpush.bf16.msra.mxu0 %v1328
  %2150 = vmatpush.bf16.msra.mxu0 %v1327
  %2151 = vmatpush.bf16.msra.mxu0 %v1326
  %2152 = vmatpush.bf16.msra.mxu0 %v1325
  %2153 = vmatmul.bf16.gmra.mxu0 %v2037
  %v2154 = vpop.f32.mrf.mxu0
  %v2155 = vadd.f32 %v2142, %v2154
  %v2156 = vpop.f32.mrf.mxu0
  %2157 = vdwg.mxu0
  %2158 = vmatpush.bf16.msra.mxu0 %v1340
  %2159 = vmatpush.bf16.msra.mxu0 %v1339
  %2160 = vmatpush.bf16.msra.mxu0 %v1338
  %2161 = vmatpush.bf16.msra.mxu0 %v1337
  %2162 = vmatpush.bf16.msra.mxu0 %v1336
  %2163 = vmatpush.bf16.msra.mxu0 %v1335
  %2164 = vmatpush.bf16.msra.mxu0 %v1334
  %2165 = vmatpush.bf16.msra.mxu0 %v1333
  %2166 = vmatmul.bf16.gmra.mxu0 %v2038
  %v2167 = vpop.f32.mrf.mxu0
  %v2168 = vadd.f32 %v2155, %v2167
  %v2169 = vpop.f32.mrf.mxu0
  %2170 = vdwg.mxu0
  %2171 = vmatpush.bf16.msra.mxu0 %v1348
  %2172 = vmatpush.bf16.msra.mxu0 %v1347
  %2173 = vmatpush.bf16.msra.mxu0 %v1346
  %2174 = vmatpush.bf16.msra.mxu0 %v1345
  %2175 = vmatpush.bf16.msra.mxu0 %v1344
  %2176 = vmatpush.bf16.msra.mxu0 %v1343
  %2177 = vmatpush.bf16.msra.mxu0 %v1342
  %2178 = vmatpush.bf16.msra.mxu0 %v1341
  %2179 = vmatmul.bf16.gmra.mxu0 %v2039
  %v2180 = vpop.f32.mrf.mxu0
  %v2181 = vadd.f32 %v2168, %v2180
  %v2182 = vpop.f32.mrf.mxu0
  %2183 = vdwg.mxu0
  %2184 = vmatpush.bf16.msra.mxu0 %v1356
  %2185 = vmatpush.bf16.msra.mxu0 %v1355
  %2186 = vmatpush.bf16.msra.mxu0 %v1354
  %2187 = vmatpush.bf16.msra.mxu0 %v1353
  %2188 = vmatpush.bf16.msra.mxu0 %v1352
  %2189 = vmatpush.bf16.msra.mxu0 %v1351
  %2190 = vmatpush.bf16.msra.mxu0 %v1350
  %2191 = vmatpush.bf16.msra.mxu0 %v1349
  %2192 = vmatmul.bf16.gmra.mxu0 %v2040
  %v2193 = vpop.f32.mrf.mxu0
  %v2194 = vadd.f32 %v2181, %v2193
  %v2195 = vpop.f32.mrf.mxu0
  %2196 = vdwg.mxu0
  %v2197 = vmax.f32 %v2194, 0.0
  %s2198 = scalar_lea.vmem %s2, 96
  %v2199 = vld [vmem:[%s2198] sm:$0xf]
  %v2200 = vld [vmem:[%s2198 + $0x4] sm:$0xf]
  %v2201 = vld [vmem:[%s2198 + $0x8] sm:$0xf]
  %v2202 = vld [vmem:[%s2198 + $0xc] sm:$0xf]
  %v2203 = vld [vmem:[%s2198 + $0x10] sm:$0xf]
  %v2204 = vld [vmem:[%s2198 + $0x14] sm:$0xf]
  %v2205 = vld [vmem:[%s2198 + $0x18] sm:$0xf]
  %v2206 = vld [vmem:[%s2198 + $0x1c] sm:$0xf]
  %v2207 = vld [vmem:[%s5 + $0x5] ss:$0 sm:$0xff]
  %v2208 = vpack.c.bf16 %v2197, %v2197
  %2210 = vrot.lane.b32.xlu0 %v2208, 112
  %v2211 = vpop.permute.xlu0 %2210
  %v2220 = vunpack.c.l.b16 %v2199
  %v2221 = vunpack.c.l.b16 %v2200
  %v2222 = vunpack.c.l.b16 %v2201
  %v2223 = vunpack.c.l.b16 %v2202
  %v2224 = vunpack.c.l.b16 %v2203
  %v2225 = vunpack.c.l.b16 %v2204
  %v2226 = vunpack.c.l.b16 %v2205
  %v2227 = vunpack.c.l.b16 %v2206
  %v2228 = vpack.c.b16 %v2221, %v2220
  %v2229 = vpack.c.b16 %v2223, %v2222
  %v2230 = vpack.c.b16 %v2225, %v2224
  %v2231 = vpack.c.b16 %v2227, %v2226
  %v2237 = vsel %vm252, %v2211, 0
  %2239 = vmatpush.bf16.msra.mxu0 0
  %2240 = vmatpush.bf16.msra.mxu0 0
  %2241 = vmatpush.bf16.msra.mxu0 0
  %2242 = vmatpush.bf16.msra.mxu0 0
  %2243 = vmatpush.bf16.msra.mxu0 %v2231
  %2244 = vmatpush.bf16.msra.mxu0 %v2230
  %2245 = vmatpush.bf16.msra.mxu0 %v2229
  %2246 = vmatpush.bf16.msra.mxu0 %v2228
  %2247 = vmatmul.bf16.gmra.mxu0 %v2237
  %v2248 = vpop.f32.mrf.mxu0
  %v2249 = vadd.f32 %v2207, %v2248
  %v2250 = vpop.f32.mrf.mxu0
  %2251 = vdwg.mxu0
  %v2252 = vmax.f32 %v2249, 0.0
  %s2253 = scalar_lea.vmem %s2, 128
  %v2254 = vld [vmem:[%s2253] sm:$0xf]
  %v2255 = vld [vmem:[%s2253 + $0x4] sm:$0xf]
  %v2256 = vld [vmem:[%s2253 + $0x8] sm:$0xf]
  %v2257 = vld [vmem:[%s2253 + $0xc] sm:$0xf]
  %v2258 = vld [vmem:[%s2253 + $0x10] sm:$0xf]
  %v2259 = vld [vmem:[%s2253 + $0x14] sm:$0xf]
  %v2260 = vld [vmem:[%s2253 + $0x18] sm:$0xf]
  %v2261 = vld [vmem:[%s2253 + $0x1c] sm:$0xf]
  %v2262 = vld [vmem:[%s5 + $0x6] ss:$0 sm:$0xff]
  %v2263 = vpack.c.bf16 %v2252, %v2252
  %v2272 = vunpack.c.l.b16 %v2254
  %v2273 = vunpack.c.l.b16 %v2255
  %v2274 = vunpack.c.l.b16 %v2256
  %v2275 = vunpack.c.l.b16 %v2257
  %v2276 = vunpack.c.l.b16 %v2258
  %v2277 = vunpack.c.l.b16 %v2259
  %v2278 = vunpack.c.l.b16 %v2260
  %v2279 = vunpack.c.l.b16 %v2261
  %v2280 = vpack.c.b16 %v2273, %v2272
  %v2281 = vpack.c.b16 %v2275, %v2274
  %v2282 = vpack.c.b16 %v2277, %v2276
  %v2283 = vpack.c.b16 %v2279, %v2278
  %v2289 = vsel %vm252, %v2263, 0
  %2291 = vmatpush.bf16.msra.mxu0 0
  %2292 = vmatpush.bf16.msra.mxu0 0
  %2293 = vmatpush.bf16.msra.mxu0 0
  %2294 = vmatpush.bf16.msra.mxu0 0
  %2295 = vmatpush.bf16.msra.mxu0 %v2283
  %2296 = vmatpush.bf16.msra.mxu0 %v2282
  %2297 = vmatpush.bf16.msra.mxu0 %v2281
  %2298 = vmatpush.bf16.msra.mxu0 %v2280
  %2299 = vmatmul.bf16.gmra.mxu0 %v2289
  %v2300 = vpop.f32.mrf.mxu0
  %v2301 = vadd.f32 %v2262, %v2300
  %v2302 = vpop.f32.mrf.mxu0
  %2303 = vdwg.mxu0
  %v2304 = vmax.f32 %v2301, 0.0
  %s2305 = scalar_lea.vmem %s2, 160
  %v2306 = vld [vmem:[%s2305] sm:$0xf]
  %v2307 = vld [vmem:[%s2305 + $0x4] sm:$0xf]
  %v2308 = vld [vmem:[%s2305 + $0x8] sm:$0xf]
  %v2309 = vld [vmem:[%s2305 + $0xc] sm:$0xf]
  %v2310 = vld [vmem:[%s2305 + $0x10] sm:$0xf]
  %v2311 = vld [vmem:[%s2305 + $0x14] sm:$0xf]
  %v2312 = vld [vmem:[%s2305 + $0x18] sm:$0xf]
  %v2313 = vld [vmem:[%s2305 + $0x1c] sm:$0xf]
  %v2314 = vld [vmem:[%s5 + $0x7] ss:$0 sm:$0xff]
  %v2315 = vpack.c.bf16 %v2304, %v2304
  %v2324 = vunpack.c.l.b16 %v2306
  %v2325 = vunpack.c.l.b16 %v2307
  %v2326 = vunpack.c.l.b16 %v2308
  %v2327 = vunpack.c.l.b16 %v2309
  %v2328 = vunpack.c.l.b16 %v2310
  %v2329 = vunpack.c.l.b16 %v2311
  %v2330 = vunpack.c.l.b16 %v2312
  %v2331 = vunpack.c.l.b16 %v2313
  %v2332 = vpack.c.b16 %v2325, %v2324
  %v2333 = vpack.c.b16 %v2327, %v2326
  %v2334 = vpack.c.b16 %v2329, %v2328
  %v2335 = vpack.c.b16 %v2331, %v2330
  %v2341 = vsel %vm252, %v2315, 0
  %2343 = vmatpush.bf16.msra.mxu0 0
  %2344 = vmatpush.bf16.msra.mxu0 0
  %2345 = vmatpush.bf16.msra.mxu0 0
  %2346 = vmatpush.bf16.msra.mxu0 0
  %2347 = vmatpush.bf16.msra.mxu0 %v2335
  %2348 = vmatpush.bf16.msra.mxu0 %v2334
  %2349 = vmatpush.bf16.msra.mxu0 %v2333
  %2350 = vmatpush.bf16.msra.mxu0 %v2332
  %2351 = vmatmul.bf16.gmra.mxu0 %v2341
  %v2352 = vpop.f32.mrf.mxu0
  %v2353 = vadd.f32 %v2314, %v2352
  %v2354 = vpop.f32.mrf.mxu0
  %2355 = vdwg.mxu0
  %v2356 = vxor.u32 %v2353, 2147483648
  %v2357 = vmul.f32 %v2356, 1.442695
  %v2358 = vpow.pop %v2357
  %v2359 = vadd.f32 %v2358, 1.0
  %v2360 = vrcp.pop %v2359
  %v2361 = vmul.f32 %v2359, %v2360
  %v2362 = vsub.f32 1.0, %v2361
  %v2363 = vmul.f32 %v2360, %v2362
  %v2364 = vadd.f32 %v2360, %v2363
  %vm2365 = vweird.f32 %v2359
  %vm2366 = vweird.f32 %v2360
  %vm2367 = vmor %vm2365, %vm2366
  %v2368 = vsel %vm2367, %v2360, %v2364
  %v2369 = vand.u32 2147483647, %v2359
  %vm2370 = vcmp.eq.f32.partialorder %v2369, 8.507059e+37
  %v2371 = vand.u32 %v2359, 2147483648
  %v2372 = vor.u32 1.1754944e-38, %v2371
  %v2373 = vsel %vm2370, %v2372, %v2368
  %v2374 = vmul.f32 1.0, %v2373
  %v2375 = vstv %s1638
  %v2376 = vadd.f32 %v2375, 0.0
  %v2377 = vsel %vm252, %v2374, %v2376
  %2378 = vst [vmem:[%s6] sm:$0x3] %v2377
  // Predicated region
  $region26: #{convnet_forward.1} parent=0 // pred_check
    _
  $region27: #{convnet_forward.1} parent=0 // pred_check_branch
    %2380 = sbr.rel (0) target = $region29
  $region28: #{convnet_forward.1} parent=0 // pred_region
    _
  $region29: #{convnet_forward.1} parent=0 // pred_fallthru
    _
  // Predicated region
  $region30: #{convnet_forward.1} parent=0 // pred_check
    _
  $region31: #{convnet_forward.1} parent=0 // pred_check_branch
    %2382 = sbr.rel (0) target = $region33
  $region32: #{convnet_forward.1} parent=0 // pred_region
    _
  $region33: #{convnet_forward.1} parent=0 // pred_fallthru
    _

</llo_original>
